<compile_context>
chip_gen: v7x
topology: tpu7x:2x2x1
jax: 0.10.0
libtpu: 0.0.40
codegen_flags: <defaults>
</compile_context>

<pallas_src>
import jax
import jax.numpy as jnp
from jax.experimental import pallas as pl
from jax.experimental.pallas import tpu as pltpu

LN_EPS = 1e-5  # PyTorch nn.LayerNorm default


def _round_up(x: int, m: int) -> int:
    return (x + m - 1) // m * m


def _cdiv(a: int, b: int) -> int:
    return -(-a // b)


# ----------------------------------------------------------------------------
# Kernel
# ----------------------------------------------------------------------------
def _make_mlp_kernel(nb_layers: int, hidden_true: int, compute_dtype):
    """Kernel for (nb_layers + 1) x (Linear->LN->ReLU) + final Linear.

    Ref order (after state/action, before out), all lane-padded:
      W0_state [S, Hp], W0_action [A, Hp],
      (W_hidden [nb_layers, Hp, Hp]   -- only if nb_layers > 0),
      W_last [Hp, Op], b_last [1, Op],
      vec [(nb_layers+1)*3, Hp]       -- rows per LN layer: bias, gamma, beta.
    """
    inv_n = 1.0 / float(hidden_true)

    def layernorm_relu(h, g, be):
        # One-pass stats over the padded lane width.  Padded lanes are exactly
        # zero, so dividing by the true feature count gives PyTorch-equivalent
        # (biased-variance) statistics.  Clamp the variance at 0 to guard
        # against catastrophic cancellation of E[x^2] - E[x]^2.
        s = jnp.sum(h, axis=-1, keepdims=True)
        ss = jnp.sum(h * h, axis=-1, keepdims=True)
        mu = s * inv_n
        var = jnp.maximum(ss * inv_n - mu * mu, 0.0)
        h = (h - mu) * jax.lax.rsqrt(var + LN_EPS)
        h = h * g + be              # padded lanes: gamma = beta = 0 -> stay 0
        return jnp.maximum(h, 0.0)  # ReLU

    def kernel(state_ref, action_ref, w0s_ref, w0a_ref, *rest):
        out_ref = rest[-1]
        vec_ref = rest[-2]
        blast_ref = rest[-3]
        wlast_ref = rest[-4]
        wh_ref = rest[0] if nb_layers > 0 else None
        cdt = compute_dtype

        vec = vec_ref[...]          # [(L+1)*3, Hp], f32 -- tiny, load once

        def ln_params(l):
            r = 3 * l
            return vec[r:r + 1], vec[r + 1:r + 2], vec[r + 2:r + 3]

        # Layer 0: split-input linear (replaces the torch.cat + single matmul).
        b0, g0, be0 = ln_params(0)
        h = (jnp.dot(state_ref[...].astype(cdt), w0s_ref[...],
                     preferred_element_type=jnp.float32)
             + jnp.dot(action_ref[...].astype(cdt), w0a_ref[...],
                       preferred_element_type=jnp.float32)
             + b0)
        h = layernorm_relu(h, g0, be0)

        # Hidden layers (statically unrolled; static index into stacked W).
        for l in range(nb_layers):
            b, g, be = ln_params(l + 1)
            h = jnp.dot(h.astype(cdt), wh_ref[l],
                        preferred_element_type=jnp.float32) + b
            h = layernorm_relu(h, g, be)

        # Final Linear (bias zero-initialized in the torch module; output
        # columns zero-padded to a lane-dense width).
        out_ref[...] = (jnp.dot(h.astype(cdt), wlast_ref[...],
                                preferred_element_type=jnp.float32)
                        + blast_ref[...]).astype(out_ref.dtype)

    return kernel


# ----------------------------------------------------------------------------
# One-time parameter preparation (hoisted out of the forward path)
# ----------------------------------------------------------------------------
def prepare_params(params, nb_state_feats, nb_layers, *,
                   compute_dtype=jnp.bfloat16):
    """Pad / split / cast the flat (unpadded) torch-style parameter list ONCE.

    params = [W0, b0, g0, beta0, W1, b1, g1, beta1, ..., W_last, b_last]
    with W0 [S+A, H], Wi [H, H], W_last [H, O]; b/g/beta are [1, F].
    """
    S = nb_state_feats
    w0 = params[0]
    H = w0.shape[1]
    A = w0.shape[0] - S
    w_last = params[4 * (nb_layers + 1)]
    b_last = params[4 * (nb_layers + 1) + 1]
    O = w_last.shape[1]

    # Shape asserts: the zero-padding invariants below require UNPADDED params.
    assert A > 0, "W0 must have nb_state_feats + nb_actions rows"
    for l in range(nb_layers + 1):
        w, b, g, be = params[4 * l:4 * l + 4]
        assert w.shape[1] == H and b.shape == (1, H)
        assert g.shape == (1, H) and be.shape == (1, H)
        if l > 0:
            assert w.shape == (H, H)
    assert w_last.shape == (H, O) and b_last.shape == (1, O)

    Hp = _round_up(H, 128)          # lane-dense hidden width
    Op = _round_up(O, 128)          # lane-dense output width

    def pad_cols(a, c):
        return jnp.pad(a, ((0, 0), (0, c - a.shape[1])))

    def pad_rows(a, r):
        return jnp.pad(a, ((0, r - a.shape[0]), (0, 0)))

    w0_s = pad_cols(w0[:S], Hp).astype(compute_dtype)
    w0_a = pad_cols(w0[S:], Hp).astype(compute_dtype)

    wh = None
    if nb_layers > 0:
        wh = jnp.stack([pad_rows(pad_cols(params[4 * (l + 1)], Hp), Hp)
                        for l in range(nb_layers)]).astype(compute_dtype)

    # Stacked (bias, gamma, beta) rows per LN layer -- kept in f32.
    rows = []
    for l in range(nb_layers + 1):
        b, g, be = params[4 * l + 1], params[4 * l + 2], params[4 * l + 3]
        rows += [pad_cols(b, Hp), pad_cols(g, Hp), pad_cols(be, Hp)]
    vec = jnp.concatenate(rows, axis=0).astype(jnp.float32)

    w_last_p = pad_rows(pad_cols(w_last, Op), Hp).astype(compute_dtype)
    b_last_p = pad_cols(b_last, Op).astype(jnp.float32)

    return dict(w0_s=w0_s, w0_a=w0_a, wh=wh, w_last=w_last_p, b_last=b_last_p,
                vec=vec, S=S, A=A, H=H, O=O, Hp=Hp, Op=Op,
                nb_layers=nb_layers, compute_dtype=compute_dtype)


# ----------------------------------------------------------------------------
# Forward wrapper
# ----------------------------------------------------------------------------
def continuous_advantage_mlp(state, action, prepared, *, block_batch=512):
    """Forward pass. `prepared` comes from prepare_params()."""
    B, S = state.shape
    _, A = action.shape
    assert S == prepared["S"] and A == prepared["A"]
    nb_layers = prepared["nb_layers"]
    H, O = prepared["H"], prepared["O"]
    Hp, Op = prepared["Hp"], prepared["Op"]
    cdt = prepared["compute_dtype"]

    # ---------- batch tiling ----------
    # Minimize batch padding (16-aligned sublanes for bf16 packing) and give
    # the grid >= 2 steps whenever B allows so v7x megacore sharding has work
    # for both TensorCores.  (Note: for MXU-bound Hp>=512 configs, 256-aligned
    # M-tiles would improve systolic-array occupancy at the cost of padding.)
    n_tiles = max(1, _cdiv(B, block_batch))
    if n_tiles == 1 and B >= 32:
        n_tiles = 2
    TB = _round_up(_cdiv(B, n_tiles), 16)
    Bp = _round_up(B, TB)
    grid = (Bp // TB,)
    if Bp != B:
        state = jnp.pad(state, ((0, Bp - B), (0, 0)))
        action = jnp.pad(action, ((0, Bp - B), (0, 0)))

    resident_arrays = [prepared["w0_s"], prepared["w0_a"]]
    if prepared["wh"] is not None:
        resident_arrays.append(prepared["wh"])
    resident_arrays += [prepared["w_last"], prepared["b_last"], prepared["vec"]]

    # ---------- VMEM budget ----------
    param_bytes = sum(int(a.size) * a.dtype.itemsize for a in resident_arrays)
    stream_bytes = (2 * TB * (S + A) * state.dtype.itemsize    # in (dbl-buf)
                    + 2 * TB * Op * 4)                          # out (dbl-buf)
    scratch_bytes = 4 * TB * Hp * 4                             # act + temps
    # Budget with 2x params so the double-buffered fallback also fits.
    needed = 2 * param_bytes + stream_bytes + scratch_bytes
    try:
        vmem_cap = int(pltpu.get_tpu_info().vmem_capacity_bytes)
    except Exception:
        vmem_cap = 64 * 1024 * 1024     # v7x per-TC capacity (most restrictive)
    vmem_limit = int(min(max(needed * 5 // 4 + (2 << 20), 32 << 20),
                         vmem_cap * 17 // 20))
    # TODO(synk): if param_bytes alone exceeds ~60% of vmem_cap (possible on
    # v7x for wide/deep configs), stream the hidden-layer weights over an
    # extra grid axis (or pltpu.emit_pipeline over Hp chunks) instead of
    # keeping every layer resident.

    kernel = _make_mlp_kernel(nb_layers, H, cdt)

    # Advisory cost estimate for XLA scheduling around the custom call.
    flops = 2 * Bp * ((S + A) * Hp + nb_layers * Hp * Hp + Hp * Op)
    bytes_accessed = (Bp * (S + A) * state.dtype.itemsize
                      + Bp * Op * 4 + param_bytes)
    cost = pl.CostEstimate(flops=flops,
                           transcendentals=Bp * (nb_layers + 1),
                           bytes_accessed=bytes_accessed)

    def build_call(single_buffer_params: bool):
        def resident(a):
            kwargs = {}
            if single_buffer_params:
                # Constant block index -> no point double-buffering; halves
                # the resident-parameter VMEM footprint.
                kwargs["pipeline_mode"] = pl.Buffered(1)
            return pl.BlockSpec(a.shape, lambda i: (0,) * a.ndim, **kwargs)

        in_specs = ([pl.BlockSpec((TB, S), lambda i: (i, 0)),
                     pl.BlockSpec((TB, A), lambda i: (i, 0))]
                    + [resident(a) for a in resident_arrays])
        out_spec = pl.BlockSpec((TB, Op), lambda i: (i, 0))

        return pl.pallas_call(
            kernel,
            out_shape=jax.ShapeDtypeStruct((Bp, Op), jnp.float32),
            grid_spec=pltpu.PrefetchScalarGridSpec(
                num_scalar_prefetch=0,
                grid=grid,
                in_specs=in_specs,
                out_specs=out_spec,
            ),
            compiler_params=pltpu.CompilerParams(
                dimension_semantics=("parallel",),   # megacore sharding (v7x)
                vmem_limit_bytes=vmem_limit),
            cost_estimate=cost,
        )

    args = (state, action, *resident_arrays)
    try:
        out = build_call(True)(*args)
    except Exception:
        # Fallback for lowerings that reject single-buffered resident blocks.
        out = build_call(False)(*args)

    return out[:B, :O]


# ----------------------------------------------------------------------------
# Synthetic init + pure-JAX reference (validation)
# ----------------------------------------------------------------------------
def init_params(key, nb_inputs, nb_outputs, nb_layers, hidden_size):
    """Synthetic init matching the torch module's shapes (unpadded).
    Biases / LN params kept 2-D ([1, F]) for TPU-friendly layout."""
    params = []
    fan_in = nb_inputs
    for _ in range(nb_layers + 1):
        key, kw, kb, kg, kbe = jax.random.split(key, 5)
        bound = 1.0 / jnp.sqrt(fan_in)
        params.append(jax.random.uniform(kw, (fan_in, hidden_size),
                                         jnp.float32, -bound, bound))
        params.append(jax.random.uniform(kb, (1, hidden_size),
                                         jnp.float32, -bound, bound))
        params.append(1.0 + 0.1 * jax.random.normal(kg, (1, hidden_size),
                                                    jnp.float32))
        params.append(0.1 * jax.random.normal(kbe, (1, hidden_size),
                                              jnp.float32))
        fan_in = hidden_size
    key, kw = jax.random.split(key)
    bound = 1.0 / jnp.sqrt(hidden_size)
    params.append(jax.random.uniform(kw, (hidden_size, nb_outputs),
                                     jnp.float32, -bound, bound))
    params.append(jnp.zeros((1, nb_outputs), jnp.float32))  # last bias zeroed
    return params


def reference_forward(state, action, params, nb_layers):
    """Pure-JAX reference of the torch forward pass (for validation)."""
    h = jnp.concatenate([state, action], axis=-1)
    idx = 0
    for _ in range(nb_layers + 1):
        w, b, g, be = params[idx], params[idx + 1], params[idx + 2], params[idx + 3]
        idx += 4
        h = h @ w + b
        mu = jnp.mean(h, axis=-1, keepdims=True)
        var = jnp.mean((h - mu) ** 2, axis=-1, keepdims=True)
        h = (h - mu) / jnp.sqrt(var + LN_EPS)
        h = h * g + be
        h = jnp.maximum(h, 0.0)
    return h @ params[idx] + params[idx + 1]


if __name__ == "__main__":
    # Small shapes consistent with the module's forward.
    B = 8
    nb_state_feats = 12
    nb_actions = 4
    nb_layers = 2
    hidden_size = 32
    nb_outputs = 1

    key = jax.random.PRNGKey(0)
    kp, ks, ka = jax.random.split(key, 3)

    params = init_params(kp, nb_state_feats + nb_actions, nb_outputs,
                         nb_layers, hidden_size)
    state = jax.random.normal(ks, (B, nb_state_feats), jnp.float32)
    action = jax.random.normal(ka, (B, nb_actions), jnp.float32)

    ref = reference_forward(state, action, params, nb_layers)

    # Default path: bf16 MXU operands, f32 accumulation / LayerNorm.
    prep_bf16 = prepare_params(params, nb_state_feats, nb_layers,
                               compute_dtype=jnp.bfloat16)
    out_bf16 = continuous_advantage_mlp(state, action, prep_bf16)
    out_bf16 = jax.block_until_ready(out_bf16)
    assert out_bf16.shape == (B, nb_outputs)
    assert jnp.allclose(out_bf16, ref, atol=3e-2, rtol=3e-2)

    # f32 operand path (exactness check).
    prep_f32 = prepare_params(params, nb_state_feats, nb_layers,
                              compute_dtype=jnp.float32)
    out_f32 = continuous_advantage_mlp(state, action, prep_f32)
    out_f32 = jax.block_until_ready(out_f32)
    assert out_f32.shape == (B, nb_outputs)
    assert jnp.allclose(out_f32, ref, atol=1e-3, rtol=1e-3)

    print("KERNEL_OK")
</pallas_src>

<mosaic_0001>
module attributes {stable_mosaic.version = 11 : i64} {
  func.func @kernel(%arg0: i32, %arg1: memref<16x12xf32, #tpu.memory_space<vmem>>, %arg2: memref<16x4xf32, #tpu.memory_space<vmem>>, %arg3: memref<12x128xbf16, #tpu.memory_space<vmem>>, %arg4: memref<4x128xbf16, #tpu.memory_space<vmem>>, %arg5: memref<2x128x128xbf16, #tpu.memory_space<vmem>>, %arg6: memref<128x128xbf16, #tpu.memory_space<vmem>>, %arg7: memref<1x128xf32, #tpu.memory_space<vmem>>, %arg8: memref<9x128xf32, #tpu.memory_space<vmem>>, %arg9: memref<16x128xf32, #tpu.memory_space<vmem>>) attributes {dimension_semantics = [#tpu.dimension_semantics<parallel>], iteration_bounds = array<i64: 1>, scalar_prefetch = 0 : i64, scratch_operands = 0 : i64, tpu.core_type = #tpu.core_type<tc>, window_params = [{transform_indices = @transform_0, window_bounds = array<i64: 16, 12>}, {transform_indices = @transform_1, window_bounds = array<i64: 16, 4>}, {pipeline_mode = #tpu.pipeline_mode<synchronous>, transform_indices = @transform_2, window_bounds = array<i64: 12, 128>}, {pipeline_mode = #tpu.pipeline_mode<synchronous>, transform_indices = @transform_3, window_bounds = array<i64: 4, 128>}, {pipeline_mode = #tpu.pipeline_mode<synchronous>, transform_indices = @transform_4, window_bounds = array<i64: 2, 128, 128>}, {pipeline_mode = #tpu.pipeline_mode<synchronous>, transform_indices = @transform_5, window_bounds = array<i64: 128, 128>}, {pipeline_mode = #tpu.pipeline_mode<synchronous>, transform_indices = @transform_6, window_bounds = array<i64: 1, 128>}, {pipeline_mode = #tpu.pipeline_mode<synchronous>, transform_indices = @transform_7, window_bounds = array<i64: 9, 128>}, {transform_indices = @transform_8, window_bounds = array<i64: 16, 128>}]} {
    %c0 = arith.constant 0 : index
    %c0_0 = arith.constant 0 : index
    %0 = vector.load %arg8[%c0, %c0_0] : memref<9x128xf32, #tpu.memory_space<vmem>>, vector<9x128xf32>
    %1 = vector.extract_strided_slice %0 {offsets = [0, 0], sizes = [1, 128], strides = [1, 1]} : vector<9x128xf32> to vector<1x128xf32>
    %2 = vector.extract_strided_slice %0 {offsets = [1, 0], sizes = [1, 128], strides = [1, 1]} : vector<9x128xf32> to vector<1x128xf32>
    %3 = vector.extract_strided_slice %0 {offsets = [2, 0], sizes = [1, 128], strides = [1, 1]} : vector<9x128xf32> to vector<1x128xf32>
    %c0_1 = arith.constant 0 : index
    %c0_2 = arith.constant 0 : index
    %4 = vector.load %arg1[%c0_1, %c0_2] : memref<16x12xf32, #tpu.memory_space<vmem>>, vector<16x12xf32>
    %5 = arith.truncf %4 : vector<16x12xf32> to vector<16x12xbf16>
    %c0_3 = arith.constant 0 : index
    %c0_4 = arith.constant 0 : index
    %6 = vector.load %arg3[%c0_3, %c0_4] : memref<12x128xbf16, #tpu.memory_space<vmem>>, vector<12x128xbf16>
    %cst = arith.constant dense<0.000000e+00> : vector<16x128xf32>
    %7 = tpu.matmul %5, %6, %cst {dimension_numbers = #tpu.dot_dimension_numbers<[1], [0], [0], [1], [0, 0, 1, 1], [], []>} : vector<16x12xbf16>, vector<12x128xbf16>, vector<16x128xf32> -> vector<16x128xf32>
    %c0_5 = arith.constant 0 : index
    %c0_6 = arith.constant 0 : index
    %8 = vector.load %arg2[%c0_5, %c0_6] : memref<16x4xf32, #tpu.memory_space<vmem>>, vector<16x4xf32>
    %9 = arith.truncf %8 : vector<16x4xf32> to vector<16x4xbf16>
    %c0_7 = arith.constant 0 : index
    %c0_8 = arith.constant 0 : index
    %10 = vector.load %arg4[%c0_7, %c0_8] : memref<4x128xbf16, #tpu.memory_space<vmem>>, vector<4x128xbf16>
    %cst_9 = arith.constant dense<0.000000e+00> : vector<16x128xf32>
    %11 = tpu.matmul %9, %10, %cst_9 {dimension_numbers = #tpu.dot_dimension_numbers<[1], [0], [0], [1], [0, 0, 1, 1], [], []>} : vector<16x4xbf16>, vector<4x128xbf16>, vector<16x128xf32> -> vector<16x128xf32>
    %12 = arith.addf %7, %11 : vector<16x128xf32>
    %13 = vector.broadcast %1 : vector<1x128xf32> to vector<16x128xf32>
    %14 = arith.addf %12, %13 : vector<16x128xf32>
    %cst_10 = arith.constant dense<0.000000e+00> : vector<16xf32>
    %15 = vector.multi_reduction <add>, %14, %cst_10 [1] : vector<16x128xf32> to vector<16xf32>
    %16 = vector.shape_cast %15 : vector<16xf32> to vector<16x1xf32>
    %17 = arith.mulf %14, %14 : vector<16x128xf32>
    %cst_11 = arith.constant dense<0.000000e+00> : vector<16xf32>
    %18 = vector.multi_reduction <add>, %17, %cst_11 [1] : vector<16x128xf32> to vector<16xf32>
    %19 = vector.shape_cast %18 : vector<16xf32> to vector<16x1xf32>
    %cst_12 = arith.constant 3.125000e-02 : f32
    %20 = vector.broadcast %cst_12 : f32 to vector<16x1xf32>
    %21 = arith.mulf %16, %20 : vector<16x1xf32>
    %cst_13 = arith.constant 3.125000e-02 : f32
    %22 = vector.broadcast %cst_13 : f32 to vector<16x1xf32>
    %23 = arith.mulf %19, %22 : vector<16x1xf32>
    %24 = arith.mulf %21, %21 : vector<16x1xf32>
    %25 = arith.subf %23, %24 : vector<16x1xf32>
    %cst_14 = arith.constant 0.000000e+00 : f32
    %26 = vector.broadcast %cst_14 : f32 to vector<16x1xf32>
    %27 = arith.maximumf %25, %26 : vector<16x1xf32>
    %28 = vector.broadcast %21 : vector<16x1xf32> to vector<16x128xf32>
    %29 = arith.subf %14, %28 : vector<16x128xf32>
    %cst_15 = arith.constant 9.99999974E-6 : f32
    %30 = vector.broadcast %cst_15 : f32 to vector<16x1xf32>
    %31 = arith.addf %27, %30 : vector<16x1xf32>
    %32 = math.rsqrt %31 : vector<16x1xf32>
    %33 = vector.broadcast %32 : vector<16x1xf32> to vector<16x128xf32>
    %34 = arith.mulf %29, %33 : vector<16x128xf32>
    %35 = vector.broadcast %2 : vector<1x128xf32> to vector<16x128xf32>
    %36 = arith.mulf %34, %35 : vector<16x128xf32>
    %37 = vector.broadcast %3 : vector<1x128xf32> to vector<16x128xf32>
    %38 = arith.addf %36, %37 : vector<16x128xf32>
    %cst_16 = arith.constant 0.000000e+00 : f32
    %39 = vector.broadcast %cst_16 : f32 to vector<16x128xf32>
    %40 = arith.maximumf %38, %39 : vector<16x128xf32>
    %41 = vector.extract_strided_slice %0 {offsets = [3, 0], sizes = [1, 128], strides = [1, 1]} : vector<9x128xf32> to vector<1x128xf32>
    %42 = vector.extract_strided_slice %0 {offsets = [4, 0], sizes = [1, 128], strides = [1, 1]} : vector<9x128xf32> to vector<1x128xf32>
    %43 = vector.extract_strided_slice %0 {offsets = [5, 0], sizes = [1, 128], strides = [1, 1]} : vector<9x128xf32> to vector<1x128xf32>
    %44 = arith.truncf %40 : vector<16x128xf32> to vector<16x128xbf16>
    %c0_17 = arith.constant 0 : index
    %c0_18 = arith.constant 0 : index
    %c0_19 = arith.constant 0 : index
    %45 = vector.load %arg5[%c0_17, %c0_18, %c0_19] : memref<2x128x128xbf16, #tpu.memory_space<vmem>>, vector<1x128x128xbf16>
    %46 = vector.shape_cast %45 : vector<1x128x128xbf16> to vector<128x128xbf16>
    %cst_20 = arith.constant dense<0.000000e+00> : vector<16x128xf32>
    %47 = tpu.matmul %44, %46, %cst_20 {dimension_numbers = #tpu.dot_dimension_numbers<[1], [0], [0], [1], [0, 0, 1, 1], [], []>} : vector<16x128xbf16>, vector<128x128xbf16>, vector<16x128xf32> -> vector<16x128xf32>
    %48 = vector.broadcast %41 : vector<1x128xf32> to vector<16x128xf32>
    %49 = arith.addf %47, %48 : vector<16x128xf32>
    %cst_21 = arith.constant dense<0.000000e+00> : vector<16xf32>
    %50 = vector.multi_reduction <add>, %49, %cst_21 [1] : vector<16x128xf32> to vector<16xf32>
    %51 = vector.shape_cast %50 : vector<16xf32> to vector<16x1xf32>
    %52 = arith.mulf %49, %49 : vector<16x128xf32>
    %cst_22 = arith.constant dense<0.000000e+00> : vector<16xf32>
    %53 = vector.multi_reduction <add>, %52, %cst_22 [1] : vector<16x128xf32> to vector<16xf32>
    %54 = vector.shape_cast %53 : vector<16xf32> to vector<16x1xf32>
    %cst_23 = arith.constant 3.125000e-02 : f32
    %55 = vector.broadcast %cst_23 : f32 to vector<16x1xf32>
    %56 = arith.mulf %51, %55 : vector<16x1xf32>
    %cst_24 = arith.constant 3.125000e-02 : f32
    %57 = vector.broadcast %cst_24 : f32 to vector<16x1xf32>
    %58 = arith.mulf %54, %57 : vector<16x1xf32>
    %59 = arith.mulf %56, %56 : vector<16x1xf32>
    %60 = arith.subf %58, %59 : vector<16x1xf32>
    %cst_25 = arith.constant 0.000000e+00 : f32
    %61 = vector.broadcast %cst_25 : f32 to vector<16x1xf32>
    %62 = arith.maximumf %60, %61 : vector<16x1xf32>
    %63 = vector.broadcast %56 : vector<16x1xf32> to vector<16x128xf32>
    %64 = arith.subf %49, %63 : vector<16x128xf32>
    %cst_26 = arith.constant 9.99999974E-6 : f32
    %65 = vector.broadcast %cst_26 : f32 to vector<16x1xf32>
    %66 = arith.addf %62, %65 : vector<16x1xf32>
    %67 = math.rsqrt %66 : vector<16x1xf32>
    %68 = vector.broadcast %67 : vector<16x1xf32> to vector<16x128xf32>
    %69 = arith.mulf %64, %68 : vector<16x128xf32>
    %70 = vector.broadcast %42 : vector<1x128xf32> to vector<16x128xf32>
    %71 = arith.mulf %69, %70 : vector<16x128xf32>
    %72 = vector.broadcast %43 : vector<1x128xf32> to vector<16x128xf32>
    %73 = arith.addf %71, %72 : vector<16x128xf32>
    %cst_27 = arith.constant 0.000000e+00 : f32
    %74 = vector.broadcast %cst_27 : f32 to vector<16x128xf32>
    %75 = arith.maximumf %73, %74 : vector<16x128xf32>
    %76 = vector.extract_strided_slice %0 {offsets = [6, 0], sizes = [1, 128], strides = [1, 1]} : vector<9x128xf32> to vector<1x128xf32>
    %77 = vector.extract_strided_slice %0 {offsets = [7, 0], sizes = [1, 128], strides = [1, 1]} : vector<9x128xf32> to vector<1x128xf32>
    %78 = vector.extract_strided_slice %0 {offsets = [8, 0], sizes = [1, 128], strides = [1, 1]} : vector<9x128xf32> to vector<1x128xf32>
    %79 = arith.truncf %75 : vector<16x128xf32> to vector<16x128xbf16>
    %c1 = arith.constant 1 : index
    %c0_28 = arith.constant 0 : index
    %c0_29 = arith.constant 0 : index
    %80 = vector.load %arg5[%c1, %c0_28, %c0_29] : memref<2x128x128xbf16, #tpu.memory_space<vmem>>, vector<1x128x128xbf16>
    %81 = vector.shape_cast %80 : vector<1x128x128xbf16> to vector<128x128xbf16>
    %cst_30 = arith.constant dense<0.000000e+00> : vector<16x128xf32>
    %82 = tpu.matmul %79, %81, %cst_30 {dimension_numbers = #tpu.dot_dimension_numbers<[1], [0], [0], [1], [0, 0, 1, 1], [], []>} : vector<16x128xbf16>, vector<128x128xbf16>, vector<16x128xf32> -> vector<16x128xf32>
    %83 = vector.broadcast %76 : vector<1x128xf32> to vector<16x128xf32>
    %84 = arith.addf %82, %83 : vector<16x128xf32>
    %cst_31 = arith.constant dense<0.000000e+00> : vector<16xf32>
    %85 = vector.multi_reduction <add>, %84, %cst_31 [1] : vector<16x128xf32> to vector<16xf32>
    %86 = vector.shape_cast %85 : vector<16xf32> to vector<16x1xf32>
    %87 = arith.mulf %84, %84 : vector<16x128xf32>
    %cst_32 = arith.constant dense<0.000000e+00> : vector<16xf32>
    %88 = vector.multi_reduction <add>, %87, %cst_32 [1] : vector<16x128xf32> to vector<16xf32>
    %89 = vector.shape_cast %88 : vector<16xf32> to vector<16x1xf32>
    %cst_33 = arith.constant 3.125000e-02 : f32
    %90 = vector.broadcast %cst_33 : f32 to vector<16x1xf32>
    %91 = arith.mulf %86, %90 : vector<16x1xf32>
    %cst_34 = arith.constant 3.125000e-02 : f32
    %92 = vector.broadcast %cst_34 : f32 to vector<16x1xf32>
    %93 = arith.mulf %89, %92 : vector<16x1xf32>
    %94 = arith.mulf %91, %91 : vector<16x1xf32>
    %95 = arith.subf %93, %94 : vector<16x1xf32>
    %cst_35 = arith.constant 0.000000e+00 : f32
    %96 = vector.broadcast %cst_35 : f32 to vector<16x1xf32>
    %97 = arith.maximumf %95, %96 : vector<16x1xf32>
    %98 = vector.broadcast %91 : vector<16x1xf32> to vector<16x128xf32>
    %99 = arith.subf %84, %98 : vector<16x128xf32>
    %cst_36 = arith.constant 9.99999974E-6 : f32
    %100 = vector.broadcast %cst_36 : f32 to vector<16x1xf32>
    %101 = arith.addf %97, %100 : vector<16x1xf32>
    %102 = math.rsqrt %101 : vector<16x1xf32>
    %103 = vector.broadcast %102 : vector<16x1xf32> to vector<16x128xf32>
    %104 = arith.mulf %99, %103 : vector<16x128xf32>
    %105 = vector.broadcast %77 : vector<1x128xf32> to vector<16x128xf32>
    %106 = arith.mulf %104, %105 : vector<16x128xf32>
    %107 = vector.broadcast %78 : vector<1x128xf32> to vector<16x128xf32>
    %108 = arith.addf %106, %107 : vector<16x128xf32>
    %cst_37 = arith.constant 0.000000e+00 : f32
    %109 = vector.broadcast %cst_37 : f32 to vector<16x128xf32>
    %110 = arith.maximumf %108, %109 : vector<16x128xf32>
    %111 = arith.truncf %110 : vector<16x128xf32> to vector<16x128xbf16>
    %c0_38 = arith.constant 0 : index
    %c0_39 = arith.constant 0 : index
    %112 = vector.load %arg6[%c0_38, %c0_39] : memref<128x128xbf16, #tpu.memory_space<vmem>>, vector<128x128xbf16>
    %cst_40 = arith.constant dense<0.000000e+00> : vector<16x128xf32>
    %113 = tpu.matmul %111, %112, %cst_40 {dimension_numbers = #tpu.dot_dimension_numbers<[1], [0], [0], [1], [0, 0, 1, 1], [], []>} : vector<16x128xbf16>, vector<128x128xbf16>, vector<16x128xf32> -> vector<16x128xf32>
    %c0_41 = arith.constant 0 : index
    %c0_42 = arith.constant 0 : index
    %114 = vector.load %arg7[%c0_41, %c0_42] : memref<1x128xf32, #tpu.memory_space<vmem>>, vector<1x128xf32>
    %115 = vector.broadcast %114 : vector<1x128xf32> to vector<16x128xf32>
    %116 = arith.addf %113, %115 : vector<16x128xf32>
    %c0_43 = arith.constant 0 : index
    %c0_44 = arith.constant 0 : index
    %117 = vector.load %arg9[%c0_43, %c0_44] : memref<16x128xf32, #tpu.memory_space<vmem>>, vector<16x128xf32>
    tpu.vector_store %arg9[%c0_43, %c0_44], %116 {strides = array<i32>} : memref<16x128xf32, #tpu.memory_space<vmem>>, vector<16x128xf32>,
    return
  }
  func.func @transform_0(%arg0: i32) -> (i32, i32) {
    %c0_i32 = arith.constant 0 : i32
    %c0_i32_0 = arith.constant 0 : i32
    return %arg0, %c0_i32 : i32, i32
  }
  func.func @transform_1(%arg0: i32) -> (i32, i32) {
    %c0_i32 = arith.constant 0 : i32
    %c0_i32_0 = arith.constant 0 : i32
    return %arg0, %c0_i32 : i32, i32
  }
  func.func @transform_2(%arg0: i32) -> (i32, i32) {
    %c0_i32 = arith.constant 0 : i32
    %c0_i32_0 = arith.constant 0 : i32
    %c0_i32_1 = arith.constant 0 : i32
    return %c0_i32, %c0_i32_0 : i32, i32
  }
  func.func @transform_3(%arg0: i32) -> (i32, i32) {
    %c0_i32 = arith.constant 0 : i32
    %c0_i32_0 = arith.constant 0 : i32
    %c0_i32_1 = arith.constant 0 : i32
    return %c0_i32, %c0_i32_0 : i32, i32
  }
  func.func @transform_4(%arg0: i32) -> (i32, i32, i32) {
    %c0_i32 = arith.constant 0 : i32
    %c0_i32_0 = arith.constant 0 : i32
    %c0_i32_1 = arith.constant 0 : i32
    %c0_i32_2 = arith.constant 0 : i32
    return %c0_i32, %c0_i32_0, %c0_i32_1 : i32, i32, i32
  }
  func.func @transform_5(%arg0: i32) -> (i32, i32) {
    %c0_i32 = arith.constant 0 : i32
    %c0_i32_0 = arith.constant 0 : i32
    %c0_i32_1 = arith.constant 0 : i32
    return %c0_i32, %c0_i32_0 : i32, i32
  }
  func.func @transform_6(%arg0: i32) -> (i32, i32) {
    %c0_i32 = arith.constant 0 : i32
    %c0_i32_0 = arith.constant 0 : i32
    %c0_i32_1 = arith.constant 0 : i32
    return %c0_i32, %c0_i32_0 : i32, i32
  }
  func.func @transform_7(%arg0: i32) -> (i32, i32) {
    %c0_i32 = arith.constant 0 : i32
    %c0_i32_0 = arith.constant 0 : i32
    %c0_i32_1 = arith.constant 0 : i32
    return %c0_i32, %c0_i32_0 : i32, i32
  }
  func.func @transform_8(%arg0: i32) -> (i32, i32) {
    %c0_i32 = arith.constant 0 : i32
    %c0_i32_0 = arith.constant 0 : i32
    return %arg0, %c0_i32 : i32, i32
  }
}

module attributes {stable_mosaic.version = 11 : i64} {
  func.func @kernel(%arg0: i32, %arg1: memref<16x12xf32, #tpu.memory_space<vmem>>, %arg2: memref<16x4xf32, #tpu.memory_space<vmem>>, %arg3: memref<12x128xbf16, #tpu.memory_space<vmem>>, %arg4: memref<4x128xbf16, #tpu.memory_space<vmem>>, %arg5: memref<2x128x128xbf16, #tpu.memory_space<vmem>>, %arg6: memref<128x128xbf16, #tpu.memory_space<vmem>>, %arg7: memref<1x128xf32, #tpu.memory_space<vmem>>, %arg8: memref<9x128xf32, #tpu.memory_space<vmem>>, %arg9: memref<16x128xf32, #tpu.memory_space<vmem>>) attributes {dimension_semantics = [#tpu.dimension_semantics<parallel>], iteration_bounds = array<i64: 1>, scalar_prefetch = 0 : i64, scratch_operands = 0 : i64, tpu.core_type = #tpu.core_type<tc>, window_params = [{transform_indices = @transform_0, window_bounds = array<i64: 16, 12>}, {transform_indices = @transform_1, window_bounds = array<i64: 16, 4>}, {pipeline_mode = #tpu.pipeline_mode<synchronous>, transform_indices = @transform_2, window_bounds = array<i64: 12, 128>}, {pipeline_mode = #tpu.pipeline_mode<synchronous>, transform_indices = @transform_3, window_bounds = array<i64: 4, 128>}, {pipeline_mode = #tpu.pipeline_mode<synchronous>, transform_indices = @transform_4, window_bounds = array<i64: 2, 128, 128>}, {pipeline_mode = #tpu.pipeline_mode<synchronous>, transform_indices = @transform_5, window_bounds = array<i64: 128, 128>}, {pipeline_mode = #tpu.pipeline_mode<synchronous>, transform_indices = @transform_6, window_bounds = array<i64: 1, 128>}, {pipeline_mode = #tpu.pipeline_mode<synchronous>, transform_indices = @transform_7, window_bounds = array<i64: 9, 128>}, {transform_indices = @transform_8, window_bounds = array<i64: 16, 128>}]} {
    %c0 = arith.constant 0 : index
    %c0_0 = arith.constant 0 : index
    %0 = vector.load %arg8[%c0, %c0_0] : memref<9x128xf32, #tpu.memory_space<vmem>>, vector<9x128xf32>
    %1 = vector.extract_strided_slice %0 {offsets = [0, 0], sizes = [1, 128], strides = [1, 1]} : vector<9x128xf32> to vector<1x128xf32>
    %2 = vector.extract_strided_slice %0 {offsets = [1, 0], sizes = [1, 128], strides = [1, 1]} : vector<9x128xf32> to vector<1x128xf32>
    %3 = vector.extract_strided_slice %0 {offsets = [2, 0], sizes = [1, 128], strides = [1, 1]} : vector<9x128xf32> to vector<1x128xf32>
    %c0_1 = arith.constant 0 : index
    %c0_2 = arith.constant 0 : index
    %4 = vector.load %arg1[%c0_1, %c0_2] : memref<16x12xf32, #tpu.memory_space<vmem>>, vector<16x12xf32>
    %5 = arith.truncf %4 : vector<16x12xf32> to vector<16x12xbf16>
    %c0_3 = arith.constant 0 : index
    %c0_4 = arith.constant 0 : index
    %6 = vector.load %arg3[%c0_3, %c0_4] : memref<12x128xbf16, #tpu.memory_space<vmem>>, vector<12x128xbf16>
    %cst = arith.constant dense<0.000000e+00> : vector<16x128xf32>
    %7 = tpu.matmul %5, %6, %cst {dimension_numbers = #tpu.dot_dimension_numbers<[1], [0], [0], [1], [0, 0, 1, 1], [], []>} : vector<16x12xbf16>, vector<12x128xbf16>, vector<16x128xf32> -> vector<16x128xf32>
    %c0_5 = arith.constant 0 : index
    %c0_6 = arith.constant 0 : index
    %8 = vector.load %arg2[%c0_5, %c0_6] : memref<16x4xf32, #tpu.memory_space<vmem>>, vector<16x4xf32>
    %9 = arith.truncf %8 : vector<16x4xf32> to vector<16x4xbf16>
    %c0_7 = arith.constant 0 : index
    %c0_8 = arith.constant 0 : index
    %10 = vector.load %arg4[%c0_7, %c0_8] : memref<4x128xbf16, #tpu.memory_space<vmem>>, vector<4x128xbf16>
    %cst_9 = arith.constant dense<0.000000e+00> : vector<16x128xf32>
    %11 = tpu.matmul %9, %10, %cst_9 {dimension_numbers = #tpu.dot_dimension_numbers<[1], [0], [0], [1], [0, 0, 1, 1], [], []>} : vector<16x4xbf16>, vector<4x128xbf16>, vector<16x128xf32> -> vector<16x128xf32>
    %12 = arith.addf %7, %11 : vector<16x128xf32>
    %13 = vector.broadcast %1 : vector<1x128xf32> to vector<16x128xf32>
    %14 = arith.addf %12, %13 : vector<16x128xf32>
    %cst_10 = arith.constant dense<0.000000e+00> : vector<16xf32>
    %15 = vector.multi_reduction <add>, %14, %cst_10 [1] : vector<16x128xf32> to vector<16xf32>
    %16 = vector.shape_cast %15 : vector<16xf32> to vector<16x1xf32>
    %17 = arith.mulf %14, %14 : vector<16x128xf32>
    %cst_11 = arith.constant dense<0.000000e+00> : vector<16xf32>
    %18 = vector.multi_reduction <add>, %17, %cst_11 [1] : vector<16x128xf32> to vector<16xf32>
    %19 = vector.shape_cast %18 : vector<16xf32> to vector<16x1xf32>
    %cst_12 = arith.constant 3.125000e-02 : f32
    %20 = vector.broadcast %cst_12 : f32 to vector<16x1xf32>
    %21 = arith.mulf %16, %20 : vector<16x1xf32>
    %cst_13 = arith.constant 3.125000e-02 : f32
    %22 = vector.broadcast %cst_13 : f32 to vector<16x1xf32>
    %23 = arith.mulf %19, %22 : vector<16x1xf32>
    %24 = arith.mulf %21, %21 : vector<16x1xf32>
    %25 = arith.subf %23, %24 : vector<16x1xf32>
    %cst_14 = arith.constant 0.000000e+00 : f32
    %26 = vector.broadcast %cst_14 : f32 to vector<16x1xf32>
    %27 = arith.maximumf %25, %26 : vector<16x1xf32>
    %28 = vector.broadcast %21 : vector<16x1xf32> to vector<16x128xf32>
    %29 = arith.subf %14, %28 : vector<16x128xf32>
    %cst_15 = arith.constant 9.99999974E-6 : f32
    %30 = vector.broadcast %cst_15 : f32 to vector<16x1xf32>
    %31 = arith.addf %27, %30 : vector<16x1xf32>
    %32 = math.rsqrt %31 : vector<16x1xf32>
    %33 = vector.broadcast %32 : vector<16x1xf32> to vector<16x128xf32>
    %34 = arith.mulf %29, %33 : vector<16x128xf32>
    %35 = vector.broadcast %2 : vector<1x128xf32> to vector<16x128xf32>
    %36 = arith.mulf %34, %35 : vector<16x128xf32>
    %37 = vector.broadcast %3 : vector<1x128xf32> to vector<16x128xf32>
    %38 = arith.addf %36, %37 : vector<16x128xf32>
    %cst_16 = arith.constant 0.000000e+00 : f32
    %39 = vector.broadcast %cst_16 : f32 to vector<16x128xf32>
    %40 = arith.maximumf %38, %39 : vector<16x128xf32>
    %41 = vector.extract_strided_slice %0 {offsets = [3, 0], sizes = [1, 128], strides = [1, 1]} : vector<9x128xf32> to vector<1x128xf32>
    %42 = vector.extract_strided_slice %0 {offsets = [4, 0], sizes = [1, 128], strides = [1, 1]} : vector<9x128xf32> to vector<1x128xf32>
    %43 = vector.extract_strided_slice %0 {offsets = [5, 0], sizes = [1, 128], strides = [1, 1]} : vector<9x128xf32> to vector<1x128xf32>
    %44 = arith.truncf %40 : vector<16x128xf32> to vector<16x128xbf16>
    %c0_17 = arith.constant 0 : index
    %c0_18 = arith.constant 0 : index
    %c0_19 = arith.constant 0 : index
    %45 = vector.load %arg5[%c0_17, %c0_18, %c0_19] : memref<2x128x128xbf16, #tpu.memory_space<vmem>>, vector<1x128x128xbf16>
    %46 = vector.shape_cast %45 : vector<1x128x128xbf16> to vector<128x128xbf16>
    %cst_20 = arith.constant dense<0.000000e+00> : vector<16x128xf32>
    %47 = tpu.matmul %44, %46, %cst_20 {dimension_numbers = #tpu.dot_dimension_numbers<[1], [0], [0], [1], [0, 0, 1, 1], [], []>} : vector<16x128xbf16>, vector<128x128xbf16>, vector<16x128xf32> -> vector<16x128xf32>
    %48 = vector.broadcast %41 : vector<1x128xf32> to vector<16x128xf32>
    %49 = arith.addf %47, %48 : vector<16x128xf32>
    %cst_21 = arith.constant dense<0.000000e+00> : vector<16xf32>
    %50 = vector.multi_reduction <add>, %49, %cst_21 [1] : vector<16x128xf32> to vector<16xf32>
    %51 = vector.shape_cast %50 : vector<16xf32> to vector<16x1xf32>
    %52 = arith.mulf %49, %49 : vector<16x128xf32>
    %cst_22 = arith.constant dense<0.000000e+00> : vector<16xf32>
    %53 = vector.multi_reduction <add>, %52, %cst_22 [1] : vector<16x128xf32> to vector<16xf32>
    %54 = vector.shape_cast %53 : vector<16xf32> to vector<16x1xf32>
    %cst_23 = arith.constant 3.125000e-02 : f32
    %55 = vector.broadcast %cst_23 : f32 to vector<16x1xf32>
    %56 = arith.mulf %51, %55 : vector<16x1xf32>
    %cst_24 = arith.constant 3.125000e-02 : f32
    %57 = vector.broadcast %cst_24 : f32 to vector<16x1xf32>
    %58 = arith.mulf %54, %57 : vector<16x1xf32>
    %59 = arith.mulf %56, %56 : vector<16x1xf32>
    %60 = arith.subf %58, %59 : vector<16x1xf32>
    %cst_25 = arith.constant 0.000000e+00 : f32
    %61 = vector.broadcast %cst_25 : f32 to vector<16x1xf32>
    %62 = arith.maximumf %60, %61 : vector<16x1xf32>
    %63 = vector.broadcast %56 : vector<16x1xf32> to vector<16x128xf32>
    %64 = arith.subf %49, %63 : vector<16x128xf32>
    %cst_26 = arith.constant 9.99999974E-6 : f32
    %65 = vector.broadcast %cst_26 : f32 to vector<16x1xf32>
    %66 = arith.addf %62, %65 : vector<16x1xf32>
    %67 = math.rsqrt %66 : vector<16x1xf32>
    %68 = vector.broadcast %67 : vector<16x1xf32> to vector<16x128xf32>
    %69 = arith.mulf %64, %68 : vector<16x128xf32>
    %70 = vector.broadcast %42 : vector<1x128xf32> to vector<16x128xf32>
    %71 = arith.mulf %69, %70 : vector<16x128xf32>
    %72 = vector.broadcast %43 : vector<1x128xf32> to vector<16x128xf32>
    %73 = arith.addf %71, %72 : vector<16x128xf32>
    %cst_27 = arith.constant 0.000000e+00 : f32
    %74 = vector.broadcast %cst_27 : f32 to vector<16x128xf32>
    %75 = arith.maximumf %73, %74 : vector<16x128xf32>
    %76 = vector.extract_strided_slice %0 {offsets = [6, 0], sizes = [1, 128], strides = [1, 1]} : vector<9x128xf32> to vector<1x128xf32>
    %77 = vector.extract_strided_slice %0 {offsets = [7, 0], sizes = [1, 128], strides = [1, 1]} : vector<9x128xf32> to vector<1x128xf32>
    %78 = vector.extract_strided_slice %0 {offsets = [8, 0], sizes = [1, 128], strides = [1, 1]} : vector<9x128xf32> to vector<1x128xf32>
    %79 = arith.truncf %75 : vector<16x128xf32> to vector<16x128xbf16>
    %c1 = arith.constant 1 : index
    %c0_28 = arith.constant 0 : index
    %c0_29 = arith.constant 0 : index
    %80 = vector.load %arg5[%c1, %c0_28, %c0_29] : memref<2x128x128xbf16, #tpu.memory_space<vmem>>, vector<1x128x128xbf16>
    %81 = vector.shape_cast %80 : vector<1x128x128xbf16> to vector<128x128xbf16>
    %cst_30 = arith.constant dense<0.000000e+00> : vector<16x128xf32>
    %82 = tpu.matmul %79, %81, %cst_30 {dimension_numbers = #tpu.dot_dimension_numbers<[1], [0], [0], [1], [0, 0, 1, 1], [], []>} : vector<16x128xbf16>, vector<128x128xbf16>, vector<16x128xf32> -> vector<16x128xf32>
    %83 = vector.broadcast %76 : vector<1x128xf32> to vector<16x128xf32>
    %84 = arith.addf %82, %83 : vector<16x128xf32>
    %cst_31 = arith.constant dense<0.000000e+00> : vector<16xf32>
    %85 = vector.multi_reduction <add>, %84, %cst_31 [1] : vector<16x128xf32> to vector<16xf32>
    %86 = vector.shape_cast %85 : vector<16xf32> to vector<16x1xf32>
    %87 = arith.mulf %84, %84 : vector<16x128xf32>
    %cst_32 = arith.constant dense<0.000000e+00> : vector<16xf32>
    %88 = vector.multi_reduction <add>, %87, %cst_32 [1] : vector<16x128xf32> to vector<16xf32>
    %89 = vector.shape_cast %88 : vector<16xf32> to vector<16x1xf32>
    %cst_33 = arith.constant 3.125000e-02 : f32
    %90 = vector.broadcast %cst_33 : f32 to vector<16x1xf32>
    %91 = arith.mulf %86, %90 : vector<16x1xf32>
    %cst_34 = arith.constant 3.125000e-02 : f32
    %92 = vector.broadcast %cst_34 : f32 to vector<16x1xf32>
    %93 = arith.mulf %89, %92 : vector<16x1xf32>
    %94 = arith.mulf %91, %91 : vector<16x1xf32>
    %95 = arith.subf %93, %94 : vector<16x1xf32>
    %cst_35 = arith.constant 0.000000e+00 : f32
    %96 = vector.broadcast %cst_35 : f32 to vector<16x1xf32>
    %97 = arith.maximumf %95, %96 : vector<16x1xf32>
    %98 = vector.broadcast %91 : vector<16x1xf32> to vector<16x128xf32>
    %99 = arith.subf %84, %98 : vector<16x128xf32>
    %cst_36 = arith.constant 9.99999974E-6 : f32
    %100 = vector.broadcast %cst_36 : f32 to vector<16x1xf32>
    %101 = arith.addf %97, %100 : vector<16x1xf32>
    %102 = math.rsqrt %101 : vector<16x1xf32>
    %103 = vector.broadcast %102 : vector<16x1xf32> to vector<16x128xf32>
    %104 = arith.mulf %99, %103 : vector<16x128xf32>
    %105 = vector.broadcast %77 : vector<1x128xf32> to vector<16x128xf32>
    %106 = arith.mulf %104, %105 : vector<16x128xf32>
    %107 = vector.broadcast %78 : vector<1x128xf32> to vector<16x128xf32>
    %108 = arith.addf %106, %107 : vector<16x128xf32>
    %cst_37 = arith.constant 0.000000e+00 : f32
    %109 = vector.broadcast %cst_37 : f32 to vector<16x128xf32>
    %110 = arith.maximumf %108, %109 : vector<16x128xf32>
    %111 = arith.truncf %110 : vector<16x128xf32> to vector<16x128xbf16>
    %c0_38 = arith.constant 0 : index
    %c0_39 = arith.constant 0 : index
    %112 = vector.load %arg6[%c0_38, %c0_39] : memref<128x128xbf16, #tpu.memory_space<vmem>>, vector<128x128xbf16>
    %cst_40 = arith.constant dense<0.000000e+00> : vector<16x128xf32>
    %113 = tpu.matmul %111, %112, %cst_40 {dimension_numbers = #tpu.dot_dimension_numbers<[1], [0], [0], [1], [0, 0, 1, 1], [], []>} : vector<16x128xbf16>, vector<128x128xbf16>, vector<16x128xf32> -> vector<16x128xf32>
    %c0_41 = arith.constant 0 : index
    %c0_42 = arith.constant 0 : index
    %114 = vector.load %arg7[%c0_41, %c0_42] : memref<1x128xf32, #tpu.memory_space<vmem>>, vector<1x128xf32>
    %115 = vector.broadcast %114 : vector<1x128xf32> to vector<16x128xf32>
    %116 = arith.addf %113, %115 : vector<16x128xf32>
    %c0_43 = arith.constant 0 : index
    %c0_44 = arith.constant 0 : index
    %117 = vector.load %arg9[%c0_43, %c0_44] : memref<16x128xf32, #tpu.memory_space<vmem>>, vector<16x128xf32>
    tpu.vector_store %arg9[%c0_43, %c0_44], %116 {strides = array<i32>} : memref<16x128xf32, #tpu.memory_space<vmem>>, vector<16x128xf32>,
    return
  }
  func.func @transform_0(%arg0: i32) -> (i32, i32) {
    %c0_i32 = arith.constant 0 : i32
    %c0_i32_0 = arith.constant 0 : i32
    return %arg0, %c0_i32 : i32, i32
  }
  func.func @transform_1(%arg0: i32) -> (i32, i32) {
    %c0_i32 = arith.constant 0 : i32
    %c0_i32_0 = arith.constant 0 : i32
    return %arg0, %c0_i32 : i32, i32
  }
  func.func @transform_2(%arg0: i32) -> (i32, i32) {
    %c0_i32 = arith.constant 0 : i32
    %c0_i32_0 = arith.constant 0 : i32
    %c0_i32_1 = arith.constant 0 : i32
    return %c0_i32, %c0_i32_0 : i32, i32
  }
  func.func @transform_3(%arg0: i32) -> (i32, i32) {
    %c0_i32 = arith.constant 0 : i32
    %c0_i32_0 = arith.constant 0 : i32
    %c0_i32_1 = arith.constant 0 : i32
    return %c0_i32, %c0_i32_0 : i32, i32
  }
  func.func @transform_4(%arg0: i32) -> (i32, i32, i32) {
    %c0_i32 = arith.constant 0 : i32
    %c0_i32_0 = arith.constant 0 : i32
    %c0_i32_1 = arith.constant 0 : i32
    %c0_i32_2 = arith.constant 0 : i32
    return %c0_i32, %c0_i32_0, %c0_i32_1 : i32, i32, i32
  }
  func.func @transform_5(%arg0: i32) -> (i32, i32) {
    %c0_i32 = arith.constant 0 : i32
    %c0_i32_0 = arith.constant 0 : i32
    %c0_i32_1 = arith.constant 0 : i32
    return %c0_i32, %c0_i32_0 : i32, i32
  }
  func.func @transform_6(%arg0: i32) -> (i32, i32) {
    %c0_i32 = arith.constant 0 : i32
    %c0_i32_0 = arith.constant 0 : i32
    %c0_i32_1 = arith.constant 0 : i32
    return %c0_i32, %c0_i32_0 : i32, i32
  }
  func.func @transform_7(%arg0: i32) -> (i32, i32) {
    %c0_i32 = arith.constant 0 : i32
    %c0_i32_0 = arith.constant 0 : i32
    %c0_i32_1 = arith.constant 0 : i32
    return %c0_i32, %c0_i32_0 : i32, i32
  }
  func.func @transform_8(%arg0: i32) -> (i32, i32) {
    %c0_i32 = arith.constant 0 : i32
    %c0_i32_0 = arith.constant 0 : i32
    return %arg0, %c0_i32 : i32, i32
  }
}

</mosaic_0001>

<llo_original>
// kernel: tpu_custom_call.1
$region0: #{tpu_custom_call.1}
  #allocation0 [shape = 'u32[]', space=smem, size = 0x4, offset = 0x4, fixed_abs, tag = 'smem constant byte address 0x4 - core index']
  #allocation1 [shape = 'u32[144,128]{1,0:T(1,128)}', space=vmem, size = 0x12000, scoped, tag = 'internal scratch']
  %s0 = inlined_call_operand.vmem [shape: f32[16,12], index: 0, kind: input, shape index: {}]
  %s1 = inlined_call_operand.vmem [shape: f32[16,4], index: 1, kind: input, shape index: {}]
  %s2 = inlined_call_operand.hbm [shape: bf16[12,128], index: 2, kind: input, shape index: {}]
  %s3 = inlined_call_operand.vmem [shape: bf16[4,128], index: 3, kind: input, shape index: {}]
  %s4 = inlined_call_operand.hbm [shape: bf16[2,128,128], index: 4, kind: input, shape index: {}]
  %s5 = inlined_call_operand.hbm [shape: bf16[128,128], index: 5, kind: input, shape index: {}]
  %s6 = inlined_call_operand.vmem [shape: f32[1,128], index: 6, kind: input, shape index: {}]
  %s7 = inlined_call_operand.vmem [shape: f32[9,128], index: 7, kind: input, shape index: {}]
  %s8 = inlined_call_operand.hbm [shape: f32[16,128], index: 8, kind: output, shape index: {}]
  %s9 = sld [smem:[#allocation0]]
  $region54: #{tpu_custom_call.1} parent=0
    _
  %s11 = ssub.s32 1, %s9
  %s12 = scalar_select 0, %s11, %s9
  $region1: #{tpu_custom_call.1} parent=0
    #allocation2 [shape = 'u8[4096]{0}', space=vmem, size = 0x1000, scoped, tag = 'input window, operand 2, single buffered']
    #allocation3 [shape = 's32[1]{0}', space=sflag, size = 0x4, scoped, tag = 'scoped memory for tpu_custom_call.1']
    #allocation4 [shape = 's32[1]{0}', space=sflag, size = 0x4, scoped, tag = 'scoped memory for tpu_custom_call.1']
    #allocation5 [shape = 'u8[65536]{0}', space=vmem, size = 0x10000, scoped, tag = 'input window, operand 4, single buffered']
    #allocation6 [shape = 's32[1]{0}', space=sflag, size = 0x4, scoped, tag = 'scoped memory for tpu_custom_call.1']
    #allocation7 [shape = 'u8[32768]{0}', space=vmem, size = 0x8000, scoped, tag = 'input window, operand 5, single buffered']
    #allocation8 [shape = 'u8[8192]{0}', space=vmem, size = 0x2000, scoped, tag = 'output window, operand 0, single buffered']
    %13 = vsyncpa [#allocation3], 0
    %14 = vsyncpa [#allocation6], 0
    %15 = vsyncpa [#allocation4], 0
    // Predicated region
    $region2: #{tpu_custom_call.1} parent=1 // pred_check
      _
    $region3: #{tpu_custom_call.1} parent=1 // pred_check_branch
      %17 = sbr.rel (0) target = $region5
    $region4: #{tpu_custom_call.1} parent=1 // pred_region
      _
    $region5: #{tpu_custom_call.1} parent=1 // pred_fallthru
      _
    // Predicated region
    $region6: #{tpu_custom_call.1} parent=1 // pred_check
      _
    $region7: #{tpu_custom_call.1} parent=1 // pred_check_branch
      %19 = sbr.rel (0) target = $region9
    $region8: #{tpu_custom_call.1} parent=1 // pred_region
      _
    $region9: #{tpu_custom_call.1} parent=1 // pred_fallthru
      _
    // Predicated region
    $region10: #{tpu_custom_call.1} parent=1 // pred_check
      _
    $region11: #{tpu_custom_call.1} parent=1 // pred_check_branch
      %21 = sbr.rel (0) target = $region13
    $region12: #{tpu_custom_call.1} parent=1 // pred_region
      %s23 = ssub.s32 128, 128
      %24 = vsyncadd [#allocation3], %s23
      %s25 = sshll.u32 [#allocation2], 4
      %s26 = int_to_ptr.vmem [resolvable:$true] %s25
      %31 = dma.hbm_to_vmem [thread:$0]  %s2, 128, %s26, [#allocation3], 64, 64, 4
    $region13: #{tpu_custom_call.1} parent=1 // pred_fallthru
      _
    // Predicated region
    $region14: #{tpu_custom_call.1} parent=1 // pred_check
      _
    $region15: #{tpu_custom_call.1} parent=1 // pred_check_branch
      %33 = sbr.rel (0) target = $region17
    $region16: #{tpu_custom_call.1} parent=1 // pred_region
      _
    $region17: #{tpu_custom_call.1} parent=1 // pred_fallthru
      _
    // Predicated region
    $region18: #{tpu_custom_call.1} parent=1 // pred_check
      _
    $region19: #{tpu_custom_call.1} parent=1 // pred_check_branch
      %35 = sbr.rel (0) target = $region21
    $region20: #{tpu_custom_call.1} parent=1 // pred_region
      %s37 = ssub.s32 2048, 2048
      %38 = vsyncadd [#allocation6], %s37
      %s39 = sshll.u32 [#allocation5], 4
      %s40 = int_to_ptr.vmem [resolvable:$true] %s39
      %45 = dma.hbm_to_vmem [thread:$0]  %s4, 2048, %s40, [#allocation6], 64, 64, 4
    $region21: #{tpu_custom_call.1} parent=1 // pred_fallthru
      _
    // Predicated region
    $region22: #{tpu_custom_call.1} parent=1 // pred_check
      _
    $region23: #{tpu_custom_call.1} parent=1 // pred_check_branch
      %47 = sbr.rel (0) target = $region25
    $region24: #{tpu_custom_call.1} parent=1 // pred_region
      %s49 = ssub.s32 1024, 1024
      %50 = vsyncadd [#allocation6], %s49
      %s51 = sshll.u32 [#allocation7], 4
      %s52 = int_to_ptr.vmem [resolvable:$true] %s51
      %57 = dma.hbm_to_vmem [thread:$0]  %s5, 1024, %s52, [#allocation6], 64, 64, 4
    $region25: #{tpu_custom_call.1} parent=1 // pred_fallthru
      _
    // Predicated region
    $region26: #{tpu_custom_call.1} parent=1 // pred_check
      _
    $region27: #{tpu_custom_call.1} parent=1 // pred_check_branch
      %59 = sbr.rel (0) target = $region29
    $region28: #{tpu_custom_call.1} parent=1 // pred_region
      _
    $region29: #{tpu_custom_call.1} parent=1 // pred_fallthru
      _
    // Predicated region
    $region30: #{tpu_custom_call.1} parent=1 // pred_check
      _
    $region31: #{tpu_custom_call.1} parent=1 // pred_check_branch
      %61 = sbr.rel (0) target = $region33
    $region32: #{tpu_custom_call.1} parent=1 // pred_region
      _
    $region33: #{tpu_custom_call.1} parent=1 // pred_fallthru
      _
    // Predicated region
    $region34: #{tpu_custom_call.1} parent=1 // pred_check
      _
    $region35: #{tpu_custom_call.1} parent=1 // pred_check_branch
      %63 = sbr.rel (0) target = $region37
    $region36: #{tpu_custom_call.1} parent=1 // pred_region
      %64 = dma.done [#allocation3], 128
    $region37: #{tpu_custom_call.1} parent=1 // pred_fallthru
      _
    // Predicated region
    $region38: #{tpu_custom_call.1} parent=1 // pred_check
      _
    $region39: #{tpu_custom_call.1} parent=1 // pred_check_branch
      %66 = sbr.rel (0) target = $region41
    $region40: #{tpu_custom_call.1} parent=1 // pred_region
      %67 = dma.done [#allocation6], 2048
    $region41: #{tpu_custom_call.1} parent=1 // pred_fallthru
      _
    // Predicated region
    $region42: #{tpu_custom_call.1} parent=1 // pred_check
      _
    $region43: #{tpu_custom_call.1} parent=1 // pred_check_branch
      %69 = sbr.rel (0) target = $region45
    $region44: #{tpu_custom_call.1} parent=1 // pred_region
      %70 = dma.done [#allocation6], 1024
    $region45: #{tpu_custom_call.1} parent=1 // pred_fallthru
      _
    %v72 = vld [vmem:[%s7] sm:$0xff]
    %v73 = vld [vmem:[%s7 + $0x8] sm:$0x1]
    %v74 = vld [vmem:[%s0] sm:$0xff]
    %v75 = vld [vmem:[%s0 + $0x8] sm:$0xff]
    %v76 = vpack.c.bf16 %v75, %v74
    %v77 = vld [vmem:[#allocation2] sm:$0xf]
    %v78 = vld [vmem:[#allocation2 + $0x4] sm:$0x3]
    %v79 = vld [vmem:[%s1] sm:$0xff]
    %v80 = vld [vmem:[%s1 + $0x8] sm:$0xff]
    %v81 = vpack.c.bf16 %v80, %v79
    %v82 = vld [vmem:[%s3] sm:$0x3]
    %vm83 = vcmask 31744
    %v85 = vsel %vm83, %v81, 0
    %vm87 = vcmask 1041408
    %v89 = vsel %vm87, %v82, 0
    %91 = vmatprep.subr.bf16.mxu0 0
    %92 = vmatpush1.bf16.msra.mxu0 %v89
    %93 = vmatprep.subr.bf16.mxu0 0
    %94 = vmatpush1.bf16.msra.mxu0 0
    %95 = vmatprep.subr.bf16.mxu0 0
    %96 = vmatpush1.bf16.msra.mxu0 0
    %97 = vmatprep.subr.bf16.mxu0 0
    %98 = vmatpush1.bf16.msra.mxu0 0
    %99 = vmatprep.subr.bf16.mxu0 0
    %100 = vmatpush1.bf16.msra.mxu0 0
    %101 = vmatprep.subr.bf16.mxu0 0
    %102 = vmatpush1.bf16.msra.mxu0 0
    %103 = vmatprep.subr.bf16.mxu0 0
    %104 = vmatpush1.bf16.msra.mxu0 0
    %105 = vmatprep.subr.bf16.mxu0 0
    %106 = vmatpush1.bf16.msra.mxu0 0
    %107 = vmatprep.subr.bf16.mxu0 0
    %108 = vmatpush1.bf16.msra.mxu0 0
    %109 = vmatprep.subr.bf16.mxu0 0
    %110 = vmatpush1.bf16.msra.mxu0 0
    %111 = vmatprep.subr.bf16.mxu0 0
    %112 = vmatpush1.bf16.msra.mxu0 0
    %113 = vmatprep.subr.bf16.mxu0 0
    %114 = vmatpush1.bf16.msra.mxu0 0
    %115 = vmatprep.subr.bf16.mxu0 0
    %116 = vmatpush1.bf16.msra.mxu0 0
    %117 = vmatprep.subr.bf16.mxu0 0
    %118 = vmatpush1.bf16.msra.mxu0 0
    %119 = vmatprep.subr.bf16.mxu0 0
    %120 = vmatpush1.bf16.msra.mxu0 0
    %121 = vmatprep.subr.bf16.mxu0 0
    %122 = vmatpush1.bf16.msra.mxu0 0
    %123 = vmatprep.mubr.bf16.mxu0 0
    %124 = vmatmul.mubr.bf16.gmra.mrb[0].mxu0 %v85
    %v125 = vpop.f32.mrb[0].mxu0
    %v126 = vadd.f32 0.0, %v125
    %v127 = vpop.f32.mrb[0].mxu0
    %v128 = vpop.f32.mrb[0].mxu0
    %v129 = vadd.f32 0.0, %v128
    %v130 = vpop.f32.mrb[0].mxu0
    %131 = vdwg.mxu0
    %v134 = vunpack.c.l.b16 %v77
    %v135 = vunpack.c.l.b16 %v78
    %v136 = vpack.c.b16 %v135, %v134
    %vm137 = vcmask 97280
    %v139 = vsel %vm137, %v76, 0
    %vm141 = vcmask 1045504
    %v143 = vsel %vm141, %v136, 0
    %145 = vmatprep.subr.bf16.mxu0 0
    %146 = vmatpush1.bf16.msra.mxu0 %v143
    %147 = vmatprep.subr.bf16.mxu0 0
    %148 = vmatpush1.bf16.msra.mxu0 0
    %149 = vmatprep.subr.bf16.mxu0 0
    %150 = vmatpush1.bf16.msra.mxu0 0
    %151 = vmatprep.subr.bf16.mxu0 0
    %152 = vmatpush1.bf16.msra.mxu0 0
    %153 = vmatprep.subr.bf16.mxu0 0
    %154 = vmatpush1.bf16.msra.mxu0 0
    %155 = vmatprep.subr.bf16.mxu0 0
    %156 = vmatpush1.bf16.msra.mxu0 0
    %157 = vmatprep.subr.bf16.mxu0 0
    %158 = vmatpush1.bf16.msra.mxu0 0
    %159 = vmatprep.subr.bf16.mxu0 0
    %160 = vmatpush1.bf16.msra.mxu0 0
    %161 = vmatprep.subr.bf16.mxu0 0
    %162 = vmatpush1.bf16.msra.mxu0 0
    %163 = vmatprep.subr.bf16.mxu0 0
    %164 = vmatpush1.bf16.msra.mxu0 0
    %165 = vmatprep.subr.bf16.mxu0 0
    %166 = vmatpush1.bf16.msra.mxu0 0
    %167 = vmatprep.subr.bf16.mxu0 0
    %168 = vmatpush1.bf16.msra.mxu0 0
    %169 = vmatprep.subr.bf16.mxu0 0
    %170 = vmatpush1.bf16.msra.mxu0 0
    %171 = vmatprep.subr.bf16.mxu0 0
    %172 = vmatpush1.bf16.msra.mxu0 0
    %173 = vmatprep.subr.bf16.mxu0 0
    %174 = vmatpush1.bf16.msra.mxu0 0
    %175 = vmatprep.subr.bf16.mxu0 0
    %176 = vmatpush1.bf16.msra.mxu0 0
    %177 = vmatprep.mubr.bf16.mxu0 0
    %178 = vmatmul.mubr.bf16.gmra.mrb[0].mxu0 %v139
    %v179 = vpop.f32.mrb[0].mxu0
    %v180 = vadd.f32 %v126, %v179
    %v181 = vpop.f32.mrb[0].mxu0
    %v182 = vpop.f32.mrb[0].mxu0
    %v183 = vadd.f32 %v129, %v182
    %v184 = vpop.f32.mrb[0].mxu0
    %185 = vdwg.mxu0
    %v186 = vlaneseq
    %v187 = vshrl.u32 %v186, 7
    %v188 = vsub.s32 0, %v187
    %v189 = vrot.slane %v72, %v188
    %v190 = vadd.f32 %v180, %v189
    %v191 = vadd.f32 %v183, %v189
    %192 = vadd.xlane.f32.xlu0 %v190
    %v193 = vpop.xlane.xlu0 %192
    %194 = vadd.xlane.f32.xlu0 %v191
    %v195 = vpop.xlane.xlu0 %194
    %v196 = vmul.f32 %v190, %v190
    %v197 = vmul.f32 %v191, %v191
    %198 = vadd.xlane.f32.xlu0 %v196
    %v199 = vpop.xlane.xlu0 %198
    %200 = vadd.xlane.f32.xlu0 %v197
    %v201 = vpop.xlane.xlu0 %200
    %v202 = vmul.f32 %v193, 0.03125
    %v203 = vmul.f32 %v195, 0.03125
    %v204 = vmul.f32 %v199, 0.03125
    %v205 = vmul.f32 %v201, 0.03125
    %v206 = vmul.f32 %v202, %v202
    %v207 = vmul.f32 %v203, %v203
    %v208 = vsub.f32 %v204, %v206
    %v209 = vsub.f32 %v205, %v207
    %v210 = vmax.f32 %v208, 0.0
    %v211 = vmax.f32 %v209, 0.0
    %v212 = vsub.f32 %v190, %v202
    %v213 = vsub.f32 %v191, %v203
    %v214 = vadd.f32 %v210, 1e-05
    %v215 = vadd.f32 %v211, 1e-05
    %v216 = vrsqrt.pop %v214
    %v217 = vrsqrt.pop %v215
    %v218 = vmul.f32 %v212, %v216
    %v219 = vmul.f32 %v213, %v217
    %v220 = vlaneseq
    %v221 = vshrl.u32 %v220, 7
    %v222 = vsub.s32 1, %v221
    %v223 = vrot.slane %v72, %v222
    %v224 = vmul.f32 %v218, %v223
    %v225 = vmul.f32 %v219, %v223
    %v226 = vlaneseq
    %v227 = vshrl.u32 %v226, 7
    %v228 = vsub.s32 2, %v227
    %v229 = vrot.slane %v72, %v228
    %v230 = vadd.f32 %v224, %v229
    %v231 = vadd.f32 %v225, %v229
    %v232 = vmax.f32 %v230, 0.0
    %v233 = vmax.f32 %v231, 0.0
    %v234 = vpack.c.bf16 %v233, %v232
    %v235 = vld [vmem:[#allocation5] sm:$0xf]
    %v236 = vld [vmem:[#allocation5 + $0x4] sm:$0xf]
    %v237 = vld [vmem:[#allocation5 + $0x8] sm:$0xf]
    %v238 = vld [vmem:[#allocation5 + $0xc] sm:$0xf]
    %v239 = vld [vmem:[#allocation5 + $0x10] sm:$0xf]
    %v240 = vld [vmem:[#allocation5 + $0x14] sm:$0xf]
    %v241 = vld [vmem:[#allocation5 + $0x18] sm:$0xf]
    %v242 = vld [vmem:[#allocation5 + $0x1c] sm:$0xf]
    %v243 = vld [vmem:[#allocation5 + $0x20] sm:$0xf]
    %v244 = vld [vmem:[#allocation5 + $0x24] sm:$0xf]
    %v245 = vld [vmem:[#allocation5 + $0x28] sm:$0xf]
    %v246 = vld [vmem:[#allocation5 + $0x2c] sm:$0xf]
    %v247 = vld [vmem:[#allocation5 + $0x30] sm:$0xf]
    %v248 = vld [vmem:[#allocation5 + $0x34] sm:$0xf]
    %v249 = vld [vmem:[#allocation5 + $0x38] sm:$0xf]
    %v250 = vld [vmem:[#allocation5 + $0x3c] sm:$0xf]
    %v251 = vlaneseq
    %v252 = vshrl.u32 %v251, 7
    %v253 = vsub.s32 3, %v252
    %v254 = vrot.slane %v72, %v253
    %v271 = vunpack.c.l.b16 %v235
    %v272 = vunpack.c.l.b16 %v236
    %v273 = vunpack.c.l.b16 %v237
    %v274 = vunpack.c.l.b16 %v238
    %v275 = vunpack.c.l.b16 %v239
    %v276 = vunpack.c.l.b16 %v240
    %v277 = vunpack.c.l.b16 %v241
    %v278 = vunpack.c.l.b16 %v242
    %v279 = vunpack.c.l.b16 %v243
    %v280 = vunpack.c.l.b16 %v244
    %v281 = vunpack.c.l.b16 %v245
    %v282 = vunpack.c.l.b16 %v246
    %v283 = vunpack.c.l.b16 %v247
    %v284 = vunpack.c.l.b16 %v248
    %v285 = vunpack.c.l.b16 %v249
    %v286 = vunpack.c.l.b16 %v250
    %v287 = vpack.c.b16 %v272, %v271
    %v288 = vpack.c.b16 %v274, %v273
    %v289 = vpack.c.b16 %v276, %v275
    %v290 = vpack.c.b16 %v278, %v277
    %v291 = vpack.c.b16 %v280, %v279
    %v292 = vpack.c.b16 %v282, %v281
    %v293 = vpack.c.b16 %v284, %v283
    %v294 = vpack.c.b16 %v286, %v285
    %303 = vmatprep.subr.bf16.mxu0 0
    %304 = vmatpush1.bf16.msra.mxu0 %v287
    %305 = vmatprep.subr.bf16.mxu0 0
    %306 = vmatpush1.bf16.msra.mxu0 %v288
    %307 = vmatprep.subr.bf16.mxu0 0
    %308 = vmatpush1.bf16.msra.mxu0 %v289
    %309 = vmatprep.subr.bf16.mxu0 0
    %310 = vmatpush1.bf16.msra.mxu0 %v290
    %311 = vmatprep.subr.bf16.mxu0 0
    %312 = vmatpush1.bf16.msra.mxu0 %v291
    %313 = vmatprep.subr.bf16.mxu0 0
    %314 = vmatpush1.bf16.msra.mxu0 %v292
    %315 = vmatprep.subr.bf16.mxu0 0
    %316 = vmatpush1.bf16.msra.mxu0 %v293
    %317 = vmatprep.subr.bf16.mxu0 0
    %318 = vmatpush1.bf16.msra.mxu0 %v294
    %319 = vmatprep.subr.bf16.mxu0 0
    %320 = vmatpush1.bf16.msra.mxu0 0
    %321 = vmatprep.subr.bf16.mxu0 0
    %322 = vmatpush1.bf16.msra.mxu0 0
    %323 = vmatprep.subr.bf16.mxu0 0
    %324 = vmatpush1.bf16.msra.mxu0 0
    %325 = vmatprep.subr.bf16.mxu0 0
    %326 = vmatpush1.bf16.msra.mxu0 0
    %327 = vmatprep.subr.bf16.mxu0 0
    %328 = vmatpush1.bf16.msra.mxu0 0
    %329 = vmatprep.subr.bf16.mxu0 0
    %330 = vmatpush1.bf16.msra.mxu0 0
    %331 = vmatprep.subr.bf16.mxu0 0
    %332 = vmatpush1.bf16.msra.mxu0 0
    %333 = vmatprep.subr.bf16.mxu0 0
    %334 = vmatpush1.bf16.msra.mxu0 0
    %335 = vmatprep.mubr.bf16.mxu0 0
    %336 = vmatmul.mubr.bf16.gmra.mrb[0].mxu0 %v234
    %v337 = vpop.f32.mrb[0].mxu0
    %v338 = vadd.f32 %v254, %v337
    %v339 = vpop.f32.mrb[0].mxu0
    %v340 = vpop.f32.mrb[0].mxu0
    %v341 = vadd.f32 %v254, %v340
    %v342 = vpop.f32.mrb[0].mxu0
    %343 = vdwg.mxu0
    %344 = vadd.xlane.f32.xlu0 %v338
    %v345 = vpop.xlane.xlu0 %344
    %346 = vadd.xlane.f32.xlu0 %v341
    %v347 = vpop.xlane.xlu0 %346
    %v348 = vmul.f32 %v338, %v338
    %v349 = vmul.f32 %v341, %v341
    %350 = vadd.xlane.f32.xlu0 %v348
    %v351 = vpop.xlane.xlu0 %350
    %352 = vadd.xlane.f32.xlu0 %v349
    %v353 = vpop.xlane.xlu0 %352
    %v354 = vmul.f32 %v345, 0.03125
    %v355 = vmul.f32 %v347, 0.03125
    %v356 = vmul.f32 %v351, 0.03125
    %v357 = vmul.f32 %v353, 0.03125
    %v358 = vmul.f32 %v354, %v354
    %v359 = vmul.f32 %v355, %v355
    %v360 = vsub.f32 %v356, %v358
    %v361 = vsub.f32 %v357, %v359
    %v362 = vmax.f32 %v360, 0.0
    %v363 = vmax.f32 %v361, 0.0
    %v364 = vsub.f32 %v338, %v354
    %v365 = vsub.f32 %v341, %v355
    %v366 = vadd.f32 %v362, 1e-05
    %v367 = vadd.f32 %v363, 1e-05
    %v368 = vrsqrt.pop %v366
    %v369 = vrsqrt.pop %v367
    %v370 = vmul.f32 %v364, %v368
    %v371 = vmul.f32 %v365, %v369
    %v372 = vlaneseq
    %v373 = vshrl.u32 %v372, 7
    %v374 = vsub.s32 4, %v373
    %v375 = vrot.slane %v72, %v374
    %v376 = vmul.f32 %v370, %v375
    %v377 = vmul.f32 %v371, %v375
    %v378 = vlaneseq
    %v379 = vshrl.u32 %v378, 7
    %v380 = vsub.s32 5, %v379
    %v381 = vrot.slane %v72, %v380
    %v382 = vadd.f32 %v376, %v381
    %v383 = vadd.f32 %v377, %v381
    %v384 = vmax.f32 %v382, 0.0
    %v385 = vmax.f32 %v383, 0.0
    %v386 = vpack.c.bf16 %v385, %v384
    %s387 = scalar_lea.vmem [#allocation5], 64
    %v388 = vld [vmem:[%s387] sm:$0xf]
    %v389 = vld [vmem:[%s387 + $0x4] sm:$0xf]
    %v390 = vld [vmem:[%s387 + $0x8] sm:$0xf]
    %v391 = vld [vmem:[%s387 + $0xc] sm:$0xf]
    %v392 = vld [vmem:[%s387 + $0x10] sm:$0xf]
    %v393 = vld [vmem:[%s387 + $0x14] sm:$0xf]
    %v394 = vld [vmem:[%s387 + $0x18] sm:$0xf]
    %v395 = vld [vmem:[%s387 + $0x1c] sm:$0xf]
    %v396 = vld [vmem:[%s387 + $0x20] sm:$0xf]
    %v397 = vld [vmem:[%s387 + $0x24] sm:$0xf]
    %v398 = vld [vmem:[%s387 + $0x28] sm:$0xf]
    %v399 = vld [vmem:[%s387 + $0x2c] sm:$0xf]
    %v400 = vld [vmem:[%s387 + $0x30] sm:$0xf]
    %v401 = vld [vmem:[%s387 + $0x34] sm:$0xf]
    %v402 = vld [vmem:[%s387 + $0x38] sm:$0xf]
    %v403 = vld [vmem:[%s387 + $0x3c] sm:$0xf]
    %v404 = vlaneseq
    %v405 = vshrl.u32 %v404, 7
    %v406 = vsub.s32 6, %v405
    %v407 = vrot.slane %v72, %v406
    %v424 = vunpack.c.l.b16 %v388
    %v425 = vunpack.c.l.b16 %v389
    %v426 = vunpack.c.l.b16 %v390
    %v427 = vunpack.c.l.b16 %v391
    %v428 = vunpack.c.l.b16 %v392
    %v429 = vunpack.c.l.b16 %v393
    %v430 = vunpack.c.l.b16 %v394
    %v431 = vunpack.c.l.b16 %v395
    %v432 = vunpack.c.l.b16 %v396
    %v433 = vunpack.c.l.b16 %v397
    %v434 = vunpack.c.l.b16 %v398
    %v435 = vunpack.c.l.b16 %v399
    %v436 = vunpack.c.l.b16 %v400
    %v437 = vunpack.c.l.b16 %v401
    %v438 = vunpack.c.l.b16 %v402
    %v439 = vunpack.c.l.b16 %v403
    %v440 = vpack.c.b16 %v425, %v424
    %v441 = vpack.c.b16 %v427, %v426
    %v442 = vpack.c.b16 %v429, %v428
    %v443 = vpack.c.b16 %v431, %v430
    %v444 = vpack.c.b16 %v433, %v432
    %v445 = vpack.c.b16 %v435, %v434
    %v446 = vpack.c.b16 %v437, %v436
    %v447 = vpack.c.b16 %v439, %v438
    %456 = vmatprep.subr.bf16.mxu0 0
    %457 = vmatpush1.bf16.msra.mxu0 %v440
    %458 = vmatprep.subr.bf16.mxu0 0
    %459 = vmatpush1.bf16.msra.mxu0 %v441
    %460 = vmatprep.subr.bf16.mxu0 0
    %461 = vmatpush1.bf16.msra.mxu0 %v442
    %462 = vmatprep.subr.bf16.mxu0 0
    %463 = vmatpush1.bf16.msra.mxu0 %v443
    %464 = vmatprep.subr.bf16.mxu0 0
    %465 = vmatpush1.bf16.msra.mxu0 %v444
    %466 = vmatprep.subr.bf16.mxu0 0
    %467 = vmatpush1.bf16.msra.mxu0 %v445
    %468 = vmatprep.subr.bf16.mxu0 0
    %469 = vmatpush1.bf16.msra.mxu0 %v446
    %470 = vmatprep.subr.bf16.mxu0 0
    %471 = vmatpush1.bf16.msra.mxu0 %v447
    %472 = vmatprep.subr.bf16.mxu0 0
    %473 = vmatpush1.bf16.msra.mxu0 0
    %474 = vmatprep.subr.bf16.mxu0 0
    %475 = vmatpush1.bf16.msra.mxu0 0
    %476 = vmatprep.subr.bf16.mxu0 0
    %477 = vmatpush1.bf16.msra.mxu0 0
    %478 = vmatprep.subr.bf16.mxu0 0
    %479 = vmatpush1.bf16.msra.mxu0 0
    %480 = vmatprep.subr.bf16.mxu0 0
    %481 = vmatpush1.bf16.msra.mxu0 0
    %482 = vmatprep.subr.bf16.mxu0 0
    %483 = vmatpush1.bf16.msra.mxu0 0
    %484 = vmatprep.subr.bf16.mxu0 0
    %485 = vmatpush1.bf16.msra.mxu0 0
    %486 = vmatprep.subr.bf16.mxu0 0
    %487 = vmatpush1.bf16.msra.mxu0 0
    %488 = vmatprep.mubr.bf16.mxu0 0
    %489 = vmatmul.mubr.bf16.gmra.mrb[0].mxu0 %v386
    %v490 = vpop.f32.mrb[0].mxu0
    %v491 = vadd.f32 %v407, %v490
    %v492 = vpop.f32.mrb[0].mxu0
    %v493 = vpop.f32.mrb[0].mxu0
    %v494 = vadd.f32 %v407, %v493
    %v495 = vpop.f32.mrb[0].mxu0
    %496 = vdwg.mxu0
    %497 = vadd.xlane.f32.xlu0 %v491
    %v498 = vpop.xlane.xlu0 %497
    %499 = vadd.xlane.f32.xlu0 %v494
    %v500 = vpop.xlane.xlu0 %499
    %v501 = vmul.f32 %v491, %v491
    %v502 = vmul.f32 %v494, %v494
    %503 = vadd.xlane.f32.xlu0 %v501
    %v504 = vpop.xlane.xlu0 %503
    %505 = vadd.xlane.f32.xlu0 %v502
    %v506 = vpop.xlane.xlu0 %505
    %v507 = vmul.f32 %v498, 0.03125
    %v508 = vmul.f32 %v500, 0.03125
    %v509 = vmul.f32 %v504, 0.03125
    %v510 = vmul.f32 %v506, 0.03125
    %v511 = vmul.f32 %v507, %v507
    %v512 = vmul.f32 %v508, %v508
    %v513 = vsub.f32 %v509, %v511
    %v514 = vsub.f32 %v510, %v512
    %v515 = vmax.f32 %v513, 0.0
    %v516 = vmax.f32 %v514, 0.0
    %v517 = vsub.f32 %v491, %v507
    %v518 = vsub.f32 %v494, %v508
    %v519 = vadd.f32 %v515, 1e-05
    %v520 = vadd.f32 %v516, 1e-05
    %v521 = vrsqrt.pop %v519
    %v522 = vrsqrt.pop %v520
    %v523 = vmul.f32 %v517, %v521
    %v524 = vmul.f32 %v518, %v522
    %v525 = vlaneseq
    %v526 = vshrl.u32 %v525, 7
    %v527 = vsub.s32 7, %v526
    %v528 = vrot.slane %v72, %v527
    %v529 = vmul.f32 %v523, %v528
    %v530 = vmul.f32 %v524, %v528
    %v531 = vlaneseq
    %v532 = vshrl.u32 %v531, 7
    %v533 = vsub.s32 0, %v532
    %v534 = vrot.slane %v73, %v533
    %v535 = vadd.f32 %v529, %v534
    %v536 = vadd.f32 %v530, %v534
    %v537 = vmax.f32 %v535, 0.0
    %v538 = vmax.f32 %v536, 0.0
    %v539 = vpack.c.bf16 %v538, %v537
    %v540 = vld [vmem:[#allocation7] sm:$0xf]
    %v541 = vld [vmem:[#allocation7 + $0x4] sm:$0xf]
    %v542 = vld [vmem:[#allocation7 + $0x8] sm:$0xf]
    %v543 = vld [vmem:[#allocation7 + $0xc] sm:$0xf]
    %v544 = vld [vmem:[#allocation7 + $0x10] sm:$0xf]
    %v545 = vld [vmem:[#allocation7 + $0x14] sm:$0xf]
    %v546 = vld [vmem:[#allocation7 + $0x18] sm:$0xf]
    %v547 = vld [vmem:[#allocation7 + $0x1c] sm:$0xf]
    %v548 = vld [vmem:[#allocation7 + $0x20] sm:$0xf]
    %v549 = vld [vmem:[#allocation7 + $0x24] sm:$0xf]
    %v550 = vld [vmem:[#allocation7 + $0x28] sm:$0xf]
    %v551 = vld [vmem:[#allocation7 + $0x2c] sm:$0xf]
    %v552 = vld [vmem:[#allocation7 + $0x30] sm:$0xf]
    %v553 = vld [vmem:[#allocation7 + $0x34] sm:$0xf]
    %v554 = vld [vmem:[#allocation7 + $0x38] sm:$0xf]
    %v555 = vld [vmem:[#allocation7 + $0x3c] sm:$0xf]
    %v556 = vld [vmem:[%s6] sm:$0x1]
    %v558 = vlaneseq
    %v559 = vshrl.u32 %v558, 7
    %v560 = vsub.s32 0, %v559
    %v561 = vrot.slane %v556, %v560
    %v579 = vunpack.c.l.b16 %v540
    %v580 = vunpack.c.l.b16 %v541
    %v581 = vunpack.c.l.b16 %v542
    %v582 = vunpack.c.l.b16 %v543
    %v583 = vunpack.c.l.b16 %v544
    %v584 = vunpack.c.l.b16 %v545
    %v585 = vunpack.c.l.b16 %v546
    %v586 = vunpack.c.l.b16 %v547
    %v587 = vunpack.c.l.b16 %v548
    %v588 = vunpack.c.l.b16 %v549
    %v589 = vunpack.c.l.b16 %v550
    %v590 = vunpack.c.l.b16 %v551
    %v591 = vunpack.c.l.b16 %v552
    %v592 = vunpack.c.l.b16 %v553
    %v593 = vunpack.c.l.b16 %v554
    %v594 = vunpack.c.l.b16 %v555
    %v595 = vpack.c.b16 %v580, %v579
    %v596 = vpack.c.b16 %v582, %v581
    %v597 = vpack.c.b16 %v584, %v583
    %v598 = vpack.c.b16 %v586, %v585
    %v599 = vpack.c.b16 %v588, %v587
    %v600 = vpack.c.b16 %v590, %v589
    %v601 = vpack.c.b16 %v592, %v591
    %v602 = vpack.c.b16 %v594, %v593
    %611 = vmatprep.subr.bf16.mxu0 0
    %612 = vmatpush1.bf16.msra.mxu0 %v595
    %613 = vmatprep.subr.bf16.mxu0 0
    %614 = vmatpush1.bf16.msra.mxu0 %v596
    %615 = vmatprep.subr.bf16.mxu0 0
    %616 = vmatpush1.bf16.msra.mxu0 %v597
    %617 = vmatprep.subr.bf16.mxu0 0
    %618 = vmatpush1.bf16.msra.mxu0 %v598
    %619 = vmatprep.subr.bf16.mxu0 0
    %620 = vmatpush1.bf16.msra.mxu0 %v599
    %621 = vmatprep.subr.bf16.mxu0 0
    %622 = vmatpush1.bf16.msra.mxu0 %v600
    %623 = vmatprep.subr.bf16.mxu0 0
    %624 = vmatpush1.bf16.msra.mxu0 %v601
    %625 = vmatprep.subr.bf16.mxu0 0
    %626 = vmatpush1.bf16.msra.mxu0 %v602
    %627 = vmatprep.subr.bf16.mxu0 0
    %628 = vmatpush1.bf16.msra.mxu0 0
    %629 = vmatprep.subr.bf16.mxu0 0
    %630 = vmatpush1.bf16.msra.mxu0 0
    %631 = vmatprep.subr.bf16.mxu0 0
    %632 = vmatpush1.bf16.msra.mxu0 0
    %633 = vmatprep.subr.bf16.mxu0 0
    %634 = vmatpush1.bf16.msra.mxu0 0
    %635 = vmatprep.subr.bf16.mxu0 0
    %636 = vmatpush1.bf16.msra.mxu0 0
    %637 = vmatprep.subr.bf16.mxu0 0
    %638 = vmatpush1.bf16.msra.mxu0 0
    %639 = vmatprep.subr.bf16.mxu0 0
    %640 = vmatpush1.bf16.msra.mxu0 0
    %641 = vmatprep.subr.bf16.mxu0 0
    %642 = vmatpush1.bf16.msra.mxu0 0
    %643 = vmatprep.mubr.bf16.mxu0 0
    %644 = vmatmul.mubr.bf16.gmra.mrb[0].mxu0 %v539
    %v645 = vpop.f32.mrb[0].mxu0
    %v646 = vadd.f32 %v561, %v645
    %v647 = vpop.f32.mrb[0].mxu0
    %v648 = vpop.f32.mrb[0].mxu0
    %v649 = vadd.f32 %v561, %v648
    %v650 = vpop.f32.mrb[0].mxu0
    %651 = vdwg.mxu0
    %652 = vst [vmem:[#allocation8] sm:$0xff] %v646
    %653 = vst [vmem:[#allocation8 + $0x8] sm:$0xff] %v649
    // Predicated region
    $region46: #{tpu_custom_call.1} parent=1 // pred_check
      _
    $region47: #{tpu_custom_call.1} parent=1 // pred_check_branch
      %655 = sbr.rel (0) target = $region49
    $region48: #{tpu_custom_call.1} parent=1 // pred_region
      %s657 = ssub.s32 256, 256
      %658 = vsyncadd [#allocation4], %s657
      %s659 = sshll.u32 [#allocation8], 4
      %s660 = int_to_ptr.vmem [resolvable:$true] %s659
      %665 = dma.vmem_to_hbm [thread:$0]  %s660, 256, %s8, [#allocation4], 128, 128, 8
    $region49: #{tpu_custom_call.1} parent=1 // pred_fallthru
      _
    // Predicated region
    $region50: #{tpu_custom_call.1} parent=1 // pred_check
      _
    $region51: #{tpu_custom_call.1} parent=1 // pred_check_branch
      %667 = sbr.rel (0) target = $region53
    $region52: #{tpu_custom_call.1} parent=1 // pred_region
      %668 = dma.done [#allocation4], 256
    $region53: #{tpu_custom_call.1} parent=1 // pred_fallthru
      _
    %669 = vsyncpa [#allocation3], 1
    %670 = vsyncpa [#allocation6], 1
    %671 = vsyncpa [#allocation4], 1

// kernel: tpu_custom_call.1
$region0: #{tpu_custom_call.1}
  #allocation0 [shape = 'u32[]', space=smem, size = 0x4, offset = 0x4, fixed_abs, tag = 'smem constant byte address 0x4 - core index']
  #allocation1 [shape = 'u32[144,128]{1,0:T(1,128)}', space=vmem, size = 0x12000, scoped, tag = 'internal scratch']
  %s0 = inlined_call_operand.vmem [shape: f32[16,12], index: 0, kind: input, shape index: {}]
  %s1 = inlined_call_operand.vmem [shape: f32[16,4], index: 1, kind: input, shape index: {}]
  %s2 = inlined_call_operand.hbm [shape: bf16[12,128], index: 2, kind: input, shape index: {}]
  %s3 = inlined_call_operand.vmem [shape: bf16[4,128], index: 3, kind: input, shape index: {}]
  %s4 = inlined_call_operand.hbm [shape: bf16[2,128,128], index: 4, kind: input, shape index: {}]
  %s5 = inlined_call_operand.hbm [shape: bf16[128,128], index: 5, kind: input, shape index: {}]
  %s6 = inlined_call_operand.vmem [shape: f32[1,128], index: 6, kind: input, shape index: {}]
  %s7 = inlined_call_operand.vmem [shape: f32[9,128], index: 7, kind: input, shape index: {}]
  %s8 = inlined_call_operand.hbm [shape: f32[16,128], index: 8, kind: output, shape index: {}]
  %s9 = sld [smem:[#allocation0]]
  $region54: #{tpu_custom_call.1} parent=0
    _
  %s11 = ssub.s32 1, %s9
  %s12 = scalar_select 0, %s11, %s9
  $region1: #{tpu_custom_call.1} parent=0
    #allocation2 [shape = 'u8[4096]{0}', space=vmem, size = 0x1000, scoped, tag = 'input window, operand 2, single buffered']
    #allocation3 [shape = 's32[1]{0}', space=sflag, size = 0x4, scoped, tag = 'scoped memory for tpu_custom_call.1']
    #allocation4 [shape = 's32[1]{0}', space=sflag, size = 0x4, scoped, tag = 'scoped memory for tpu_custom_call.1']
    #allocation5 [shape = 'u8[65536]{0}', space=vmem, size = 0x10000, scoped, tag = 'input window, operand 4, single buffered']
    #allocation6 [shape = 's32[1]{0}', space=sflag, size = 0x4, scoped, tag = 'scoped memory for tpu_custom_call.1']
    #allocation7 [shape = 'u8[32768]{0}', space=vmem, size = 0x8000, scoped, tag = 'input window, operand 5, single buffered']
    #allocation8 [shape = 'u8[8192]{0}', space=vmem, size = 0x2000, scoped, tag = 'output window, operand 0, single buffered']
    %13 = vsyncpa [#allocation3], 0
    %14 = vsyncpa [#allocation6], 0
    %15 = vsyncpa [#allocation4], 0
    // Predicated region
    $region2: #{tpu_custom_call.1} parent=1 // pred_check
      _
    $region3: #{tpu_custom_call.1} parent=1 // pred_check_branch
      %17 = sbr.rel (0) target = $region5
    $region4: #{tpu_custom_call.1} parent=1 // pred_region
      _
    $region5: #{tpu_custom_call.1} parent=1 // pred_fallthru
      _
    // Predicated region
    $region6: #{tpu_custom_call.1} parent=1 // pred_check
      _
    $region7: #{tpu_custom_call.1} parent=1 // pred_check_branch
      %19 = sbr.rel (0) target = $region9
    $region8: #{tpu_custom_call.1} parent=1 // pred_region
      _
    $region9: #{tpu_custom_call.1} parent=1 // pred_fallthru
      _
    // Predicated region
    $region10: #{tpu_custom_call.1} parent=1 // pred_check
      _
    $region11: #{tpu_custom_call.1} parent=1 // pred_check_branch
      %21 = sbr.rel (0) target = $region13
    $region12: #{tpu_custom_call.1} parent=1 // pred_region
      %s23 = ssub.s32 128, 128
      %24 = vsyncadd [#allocation3], %s23
      %s25 = sshll.u32 [#allocation2], 4
      %s26 = int_to_ptr.vmem [resolvable:$true] %s25
      %31 = dma.hbm_to_vmem [thread:$0]  %s2, 128, %s26, [#allocation3], 64, 64, 4
    $region13: #{tpu_custom_call.1} parent=1 // pred_fallthru
      _
    // Predicated region
    $region14: #{tpu_custom_call.1} parent=1 // pred_check
      _
    $region15: #{tpu_custom_call.1} parent=1 // pred_check_branch
      %33 = sbr.rel (0) target = $region17
    $region16: #{tpu_custom_call.1} parent=1 // pred_region
      _
    $region17: #{tpu_custom_call.1} parent=1 // pred_fallthru
      _
    // Predicated region
    $region18: #{tpu_custom_call.1} parent=1 // pred_check
      _
    $region19: #{tpu_custom_call.1} parent=1 // pred_check_branch
      %35 = sbr.rel (0) target = $region21
    $region20: #{tpu_custom_call.1} parent=1 // pred_region
      %s37 = ssub.s32 2048, 2048
      %38 = vsyncadd [#allocation6], %s37
      %s39 = sshll.u32 [#allocation5], 4
      %s40 = int_to_ptr.vmem [resolvable:$true] %s39
      %45 = dma.hbm_to_vmem [thread:$0]  %s4, 2048, %s40, [#allocation6], 64, 64, 4
    $region21: #{tpu_custom_call.1} parent=1 // pred_fallthru
      _
    // Predicated region
    $region22: #{tpu_custom_call.1} parent=1 // pred_check
      _
    $region23: #{tpu_custom_call.1} parent=1 // pred_check_branch
      %47 = sbr.rel (0) target = $region25
    $region24: #{tpu_custom_call.1} parent=1 // pred_region
      %s49 = ssub.s32 1024, 1024
      %50 = vsyncadd [#allocation6], %s49
      %s51 = sshll.u32 [#allocation7], 4
      %s52 = int_to_ptr.vmem [resolvable:$true] %s51
      %57 = dma.hbm_to_vmem [thread:$0]  %s5, 1024, %s52, [#allocation6], 64, 64, 4
    $region25: #{tpu_custom_call.1} parent=1 // pred_fallthru
      _
    // Predicated region
    $region26: #{tpu_custom_call.1} parent=1 // pred_check
      _
    $region27: #{tpu_custom_call.1} parent=1 // pred_check_branch
      %59 = sbr.rel (0) target = $region29
    $region28: #{tpu_custom_call.1} parent=1 // pred_region
      _
    $region29: #{tpu_custom_call.1} parent=1 // pred_fallthru
      _
    // Predicated region
    $region30: #{tpu_custom_call.1} parent=1 // pred_check
      _
    $region31: #{tpu_custom_call.1} parent=1 // pred_check_branch
      %61 = sbr.rel (0) target = $region33
    $region32: #{tpu_custom_call.1} parent=1 // pred_region
      _
    $region33: #{tpu_custom_call.1} parent=1 // pred_fallthru
      _
    // Predicated region
    $region34: #{tpu_custom_call.1} parent=1 // pred_check
      _
    $region35: #{tpu_custom_call.1} parent=1 // pred_check_branch
      %63 = sbr.rel (0) target = $region37
    $region36: #{tpu_custom_call.1} parent=1 // pred_region
      %64 = dma.done [#allocation3], 128
    $region37: #{tpu_custom_call.1} parent=1 // pred_fallthru
      _
    // Predicated region
    $region38: #{tpu_custom_call.1} parent=1 // pred_check
      _
    $region39: #{tpu_custom_call.1} parent=1 // pred_check_branch
      %66 = sbr.rel (0) target = $region41
    $region40: #{tpu_custom_call.1} parent=1 // pred_region
      %67 = dma.done [#allocation6], 2048
    $region41: #{tpu_custom_call.1} parent=1 // pred_fallthru
      _
    // Predicated region
    $region42: #{tpu_custom_call.1} parent=1 // pred_check
      _
    $region43: #{tpu_custom_call.1} parent=1 // pred_check_branch
      %69 = sbr.rel (0) target = $region45
    $region44: #{tpu_custom_call.1} parent=1 // pred_region
      %70 = dma.done [#allocation6], 1024
    $region45: #{tpu_custom_call.1} parent=1 // pred_fallthru
      _
    %v72 = vld [vmem:[%s7] sm:$0xff]
    %v73 = vld [vmem:[%s7 + $0x8] sm:$0x1]
    %v74 = vld [vmem:[%s0] sm:$0xff]
    %v75 = vld [vmem:[%s0 + $0x8] sm:$0xff]
    %v76 = vpack.c.bf16 %v75, %v74
    %v77 = vld [vmem:[#allocation2] sm:$0xf]
    %v78 = vld [vmem:[#allocation2 + $0x4] sm:$0x3]
    %v79 = vld [vmem:[%s1] sm:$0xff]
    %v80 = vld [vmem:[%s1 + $0x8] sm:$0xff]
    %v81 = vpack.c.bf16 %v80, %v79
    %v82 = vld [vmem:[%s3] sm:$0x3]
    %vm83 = vcmask 31744
    %v85 = vsel %vm83, %v81, 0
    %vm87 = vcmask 1041408
    %v89 = vsel %vm87, %v82, 0
    %91 = vmatprep.subr.bf16.mxu0 0
    %92 = vmatpush1.bf16.msra.mxu0 %v89
    %93 = vmatprep.subr.bf16.mxu0 0
    %94 = vmatpush1.bf16.msra.mxu0 0
    %95 = vmatprep.subr.bf16.mxu0 0
    %96 = vmatpush1.bf16.msra.mxu0 0
    %97 = vmatprep.subr.bf16.mxu0 0
    %98 = vmatpush1.bf16.msra.mxu0 0
    %99 = vmatprep.subr.bf16.mxu0 0
    %100 = vmatpush1.bf16.msra.mxu0 0
    %101 = vmatprep.subr.bf16.mxu0 0
    %102 = vmatpush1.bf16.msra.mxu0 0
    %103 = vmatprep.subr.bf16.mxu0 0
    %104 = vmatpush1.bf16.msra.mxu0 0
    %105 = vmatprep.subr.bf16.mxu0 0
    %106 = vmatpush1.bf16.msra.mxu0 0
    %107 = vmatprep.subr.bf16.mxu0 0
    %108 = vmatpush1.bf16.msra.mxu0 0
    %109 = vmatprep.subr.bf16.mxu0 0
    %110 = vmatpush1.bf16.msra.mxu0 0
    %111 = vmatprep.subr.bf16.mxu0 0
    %112 = vmatpush1.bf16.msra.mxu0 0
    %113 = vmatprep.subr.bf16.mxu0 0
    %114 = vmatpush1.bf16.msra.mxu0 0
    %115 = vmatprep.subr.bf16.mxu0 0
    %116 = vmatpush1.bf16.msra.mxu0 0
    %117 = vmatprep.subr.bf16.mxu0 0
    %118 = vmatpush1.bf16.msra.mxu0 0
    %119 = vmatprep.subr.bf16.mxu0 0
    %120 = vmatpush1.bf16.msra.mxu0 0
    %121 = vmatprep.subr.bf16.mxu0 0
    %122 = vmatpush1.bf16.msra.mxu0 0
    %123 = vmatprep.mubr.bf16.mxu0 0
    %124 = vmatmul.mubr.bf16.gmra.mrb[0].mxu0 %v85
    %v125 = vpop.f32.mrb[0].mxu0
    %v126 = vadd.f32 0.0, %v125
    %v127 = vpop.f32.mrb[0].mxu0
    %v128 = vpop.f32.mrb[0].mxu0
    %v129 = vadd.f32 0.0, %v128
    %v130 = vpop.f32.mrb[0].mxu0
    %131 = vdwg.mxu0
    %v134 = vunpack.c.l.b16 %v77
    %v135 = vunpack.c.l.b16 %v78
    %v136 = vpack.c.b16 %v135, %v134
    %vm137 = vcmask 97280
    %v139 = vsel %vm137, %v76, 0
    %vm141 = vcmask 1045504
    %v143 = vsel %vm141, %v136, 0
    %145 = vmatprep.subr.bf16.mxu0 0
    %146 = vmatpush1.bf16.msra.mxu0 %v143
    %147 = vmatprep.subr.bf16.mxu0 0
    %148 = vmatpush1.bf16.msra.mxu0 0
    %149 = vmatprep.subr.bf16.mxu0 0
    %150 = vmatpush1.bf16.msra.mxu0 0
    %151 = vmatprep.subr.bf16.mxu0 0
    %152 = vmatpush1.bf16.msra.mxu0 0
    %153 = vmatprep.subr.bf16.mxu0 0
    %154 = vmatpush1.bf16.msra.mxu0 0
    %155 = vmatprep.subr.bf16.mxu0 0
    %156 = vmatpush1.bf16.msra.mxu0 0
    %157 = vmatprep.subr.bf16.mxu0 0
    %158 = vmatpush1.bf16.msra.mxu0 0
    %159 = vmatprep.subr.bf16.mxu0 0
    %160 = vmatpush1.bf16.msra.mxu0 0
    %161 = vmatprep.subr.bf16.mxu0 0
    %162 = vmatpush1.bf16.msra.mxu0 0
    %163 = vmatprep.subr.bf16.mxu0 0
    %164 = vmatpush1.bf16.msra.mxu0 0
    %165 = vmatprep.subr.bf16.mxu0 0
    %166 = vmatpush1.bf16.msra.mxu0 0
    %167 = vmatprep.subr.bf16.mxu0 0
    %168 = vmatpush1.bf16.msra.mxu0 0
    %169 = vmatprep.subr.bf16.mxu0 0
    %170 = vmatpush1.bf16.msra.mxu0 0
    %171 = vmatprep.subr.bf16.mxu0 0
    %172 = vmatpush1.bf16.msra.mxu0 0
    %173 = vmatprep.subr.bf16.mxu0 0
    %174 = vmatpush1.bf16.msra.mxu0 0
    %175 = vmatprep.subr.bf16.mxu0 0
    %176 = vmatpush1.bf16.msra.mxu0 0
    %177 = vmatprep.mubr.bf16.mxu0 0
    %178 = vmatmul.mubr.bf16.gmra.mrb[0].mxu0 %v139
    %v179 = vpop.f32.mrb[0].mxu0
    %v180 = vadd.f32 %v126, %v179
    %v181 = vpop.f32.mrb[0].mxu0
    %v182 = vpop.f32.mrb[0].mxu0
    %v183 = vadd.f32 %v129, %v182
    %v184 = vpop.f32.mrb[0].mxu0
    %185 = vdwg.mxu0
    %v186 = vlaneseq
    %v187 = vshrl.u32 %v186, 7
    %v188 = vsub.s32 0, %v187
    %v189 = vrot.slane %v72, %v188
    %v190 = vadd.f32 %v180, %v189
    %v191 = vadd.f32 %v183, %v189
    %192 = vadd.xlane.f32.xlu0 %v190
    %v193 = vpop.xlane.xlu0 %192
    %194 = vadd.xlane.f32.xlu0 %v191
    %v195 = vpop.xlane.xlu0 %194
    %v196 = vmul.f32 %v190, %v190
    %v197 = vmul.f32 %v191, %v191
    %198 = vadd.xlane.f32.xlu0 %v196
    %v199 = vpop.xlane.xlu0 %198
    %200 = vadd.xlane.f32.xlu0 %v197
    %v201 = vpop.xlane.xlu0 %200
    %v202 = vmul.f32 %v193, 0.03125
    %v203 = vmul.f32 %v195, 0.03125
    %v204 = vmul.f32 %v199, 0.03125
    %v205 = vmul.f32 %v201, 0.03125
    %v206 = vmul.f32 %v202, %v202
    %v207 = vmul.f32 %v203, %v203
    %v208 = vsub.f32 %v204, %v206
    %v209 = vsub.f32 %v205, %v207
    %v210 = vmax.f32 %v208, 0.0
    %v211 = vmax.f32 %v209, 0.0
    %v212 = vsub.f32 %v190, %v202
    %v213 = vsub.f32 %v191, %v203
    %v214 = vadd.f32 %v210, 1e-05
    %v215 = vadd.f32 %v211, 1e-05
    %v216 = vrsqrt.pop %v214
    %v217 = vrsqrt.pop %v215
    %v218 = vmul.f32 %v212, %v216
    %v219 = vmul.f32 %v213, %v217
    %v220 = vlaneseq
    %v221 = vshrl.u32 %v220, 7
    %v222 = vsub.s32 1, %v221
    %v223 = vrot.slane %v72, %v222
    %v224 = vmul.f32 %v218, %v223
    %v225 = vmul.f32 %v219, %v223
    %v226 = vlaneseq
    %v227 = vshrl.u32 %v226, 7
    %v228 = vsub.s32 2, %v227
    %v229 = vrot.slane %v72, %v228
    %v230 = vadd.f32 %v224, %v229
    %v231 = vadd.f32 %v225, %v229
    %v232 = vmax.f32 %v230, 0.0
    %v233 = vmax.f32 %v231, 0.0
    %v234 = vpack.c.bf16 %v233, %v232
    %v235 = vld [vmem:[#allocation5] sm:$0xf]
    %v236 = vld [vmem:[#allocation5 + $0x4] sm:$0xf]
    %v237 = vld [vmem:[#allocation5 + $0x8] sm:$0xf]
    %v238 = vld [vmem:[#allocation5 + $0xc] sm:$0xf]
    %v239 = vld [vmem:[#allocation5 + $0x10] sm:$0xf]
    %v240 = vld [vmem:[#allocation5 + $0x14] sm:$0xf]
    %v241 = vld [vmem:[#allocation5 + $0x18] sm:$0xf]
    %v242 = vld [vmem:[#allocation5 + $0x1c] sm:$0xf]
    %v243 = vld [vmem:[#allocation5 + $0x20] sm:$0xf]
    %v244 = vld [vmem:[#allocation5 + $0x24] sm:$0xf]
    %v245 = vld [vmem:[#allocation5 + $0x28] sm:$0xf]
    %v246 = vld [vmem:[#allocation5 + $0x2c] sm:$0xf]
    %v247 = vld [vmem:[#allocation5 + $0x30] sm:$0xf]
    %v248 = vld [vmem:[#allocation5 + $0x34] sm:$0xf]
    %v249 = vld [vmem:[#allocation5 + $0x38] sm:$0xf]
    %v250 = vld [vmem:[#allocation5 + $0x3c] sm:$0xf]
    %v251 = vlaneseq
    %v252 = vshrl.u32 %v251, 7
    %v253 = vsub.s32 3, %v252
    %v254 = vrot.slane %v72, %v253
    %v271 = vunpack.c.l.b16 %v235
    %v272 = vunpack.c.l.b16 %v236
    %v273 = vunpack.c.l.b16 %v237
    %v274 = vunpack.c.l.b16 %v238
    %v275 = vunpack.c.l.b16 %v239
    %v276 = vunpack.c.l.b16 %v240
    %v277 = vunpack.c.l.b16 %v241
    %v278 = vunpack.c.l.b16 %v242
    %v279 = vunpack.c.l.b16 %v243
    %v280 = vunpack.c.l.b16 %v244
    %v281 = vunpack.c.l.b16 %v245
    %v282 = vunpack.c.l.b16 %v246
    %v283 = vunpack.c.l.b16 %v247
    %v284 = vunpack.c.l.b16 %v248
    %v285 = vunpack.c.l.b16 %v249
    %v286 = vunpack.c.l.b16 %v250
    %v287 = vpack.c.b16 %v272, %v271
    %v288 = vpack.c.b16 %v274, %v273
    %v289 = vpack.c.b16 %v276, %v275
    %v290 = vpack.c.b16 %v278, %v277
    %v291 = vpack.c.b16 %v280, %v279
    %v292 = vpack.c.b16 %v282, %v281
    %v293 = vpack.c.b16 %v284, %v283
    %v294 = vpack.c.b16 %v286, %v285
    %303 = vmatprep.subr.bf16.mxu0 0
    %304 = vmatpush1.bf16.msra.mxu0 %v287
    %305 = vmatprep.subr.bf16.mxu0 0
    %306 = vmatpush1.bf16.msra.mxu0 %v288
    %307 = vmatprep.subr.bf16.mxu0 0
    %308 = vmatpush1.bf16.msra.mxu0 %v289
    %309 = vmatprep.subr.bf16.mxu0 0
    %310 = vmatpush1.bf16.msra.mxu0 %v290
    %311 = vmatprep.subr.bf16.mxu0 0
    %312 = vmatpush1.bf16.msra.mxu0 %v291
    %313 = vmatprep.subr.bf16.mxu0 0
    %314 = vmatpush1.bf16.msra.mxu0 %v292
    %315 = vmatprep.subr.bf16.mxu0 0
    %316 = vmatpush1.bf16.msra.mxu0 %v293
    %317 = vmatprep.subr.bf16.mxu0 0
    %318 = vmatpush1.bf16.msra.mxu0 %v294
    %319 = vmatprep.subr.bf16.mxu0 0
    %320 = vmatpush1.bf16.msra.mxu0 0
    %321 = vmatprep.subr.bf16.mxu0 0
    %322 = vmatpush1.bf16.msra.mxu0 0
    %323 = vmatprep.subr.bf16.mxu0 0
    %324 = vmatpush1.bf16.msra.mxu0 0
    %325 = vmatprep.subr.bf16.mxu0 0
    %326 = vmatpush1.bf16.msra.mxu0 0
    %327 = vmatprep.subr.bf16.mxu0 0
    %328 = vmatpush1.bf16.msra.mxu0 0
    %329 = vmatprep.subr.bf16.mxu0 0
    %330 = vmatpush1.bf16.msra.mxu0 0
    %331 = vmatprep.subr.bf16.mxu0 0
    %332 = vmatpush1.bf16.msra.mxu0 0
    %333 = vmatprep.subr.bf16.mxu0 0
    %334 = vmatpush1.bf16.msra.mxu0 0
    %335 = vmatprep.mubr.bf16.mxu0 0
    %336 = vmatmul.mubr.bf16.gmra.mrb[0].mxu0 %v234
    %v337 = vpop.f32.mrb[0].mxu0
    %v338 = vadd.f32 %v254, %v337
    %v339 = vpop.f32.mrb[0].mxu0
    %v340 = vpop.f32.mrb[0].mxu0
    %v341 = vadd.f32 %v254, %v340
    %v342 = vpop.f32.mrb[0].mxu0
    %343 = vdwg.mxu0
    %344 = vadd.xlane.f32.xlu0 %v338
    %v345 = vpop.xlane.xlu0 %344
    %346 = vadd.xlane.f32.xlu0 %v341
    %v347 = vpop.xlane.xlu0 %346
    %v348 = vmul.f32 %v338, %v338
    %v349 = vmul.f32 %v341, %v341
    %350 = vadd.xlane.f32.xlu0 %v348
    %v351 = vpop.xlane.xlu0 %350
    %352 = vadd.xlane.f32.xlu0 %v349
    %v353 = vpop.xlane.xlu0 %352
    %v354 = vmul.f32 %v345, 0.03125
    %v355 = vmul.f32 %v347, 0.03125
    %v356 = vmul.f32 %v351, 0.03125
    %v357 = vmul.f32 %v353, 0.03125
    %v358 = vmul.f32 %v354, %v354
    %v359 = vmul.f32 %v355, %v355
    %v360 = vsub.f32 %v356, %v358
    %v361 = vsub.f32 %v357, %v359
    %v362 = vmax.f32 %v360, 0.0
    %v363 = vmax.f32 %v361, 0.0
    %v364 = vsub.f32 %v338, %v354
    %v365 = vsub.f32 %v341, %v355
    %v366 = vadd.f32 %v362, 1e-05
    %v367 = vadd.f32 %v363, 1e-05
    %v368 = vrsqrt.pop %v366
    %v369 = vrsqrt.pop %v367
    %v370 = vmul.f32 %v364, %v368
    %v371 = vmul.f32 %v365, %v369
    %v372 = vlaneseq
    %v373 = vshrl.u32 %v372, 7
    %v374 = vsub.s32 4, %v373
    %v375 = vrot.slane %v72, %v374
    %v376 = vmul.f32 %v370, %v375
    %v377 = vmul.f32 %v371, %v375
    %v378 = vlaneseq
    %v379 = vshrl.u32 %v378, 7
    %v380 = vsub.s32 5, %v379
    %v381 = vrot.slane %v72, %v380
    %v382 = vadd.f32 %v376, %v381
    %v383 = vadd.f32 %v377, %v381
    %v384 = vmax.f32 %v382, 0.0
    %v385 = vmax.f32 %v383, 0.0
    %v386 = vpack.c.bf16 %v385, %v384
    %s387 = scalar_lea.vmem [#allocation5], 64
    %v388 = vld [vmem:[%s387] sm:$0xf]
    %v389 = vld [vmem:[%s387 + $0x4] sm:$0xf]
    %v390 = vld [vmem:[%s387 + $0x8] sm:$0xf]
    %v391 = vld [vmem:[%s387 + $0xc] sm:$0xf]
    %v392 = vld [vmem:[%s387 + $0x10] sm:$0xf]
    %v393 = vld [vmem:[%s387 + $0x14] sm:$0xf]
    %v394 = vld [vmem:[%s387 + $0x18] sm:$0xf]
    %v395 = vld [vmem:[%s387 + $0x1c] sm:$0xf]
    %v396 = vld [vmem:[%s387 + $0x20] sm:$0xf]
    %v397 = vld [vmem:[%s387 + $0x24] sm:$0xf]
    %v398 = vld [vmem:[%s387 + $0x28] sm:$0xf]
    %v399 = vld [vmem:[%s387 + $0x2c] sm:$0xf]
    %v400 = vld [vmem:[%s387 + $0x30] sm:$0xf]
    %v401 = vld [vmem:[%s387 + $0x34] sm:$0xf]
    %v402 = vld [vmem:[%s387 + $0x38] sm:$0xf]
    %v403 = vld [vmem:[%s387 + $0x3c] sm:$0xf]
    %v404 = vlaneseq
    %v405 = vshrl.u32 %v404, 7
    %v406 = vsub.s32 6, %v405
    %v407 = vrot.slane %v72, %v406
    %v424 = vunpack.c.l.b16 %v388
    %v425 = vunpack.c.l.b16 %v389
    %v426 = vunpack.c.l.b16 %v390
    %v427 = vunpack.c.l.b16 %v391
    %v428 = vunpack.c.l.b16 %v392
    %v429 = vunpack.c.l.b16 %v393
    %v430 = vunpack.c.l.b16 %v394
    %v431 = vunpack.c.l.b16 %v395
    %v432 = vunpack.c.l.b16 %v396
    %v433 = vunpack.c.l.b16 %v397
    %v434 = vunpack.c.l.b16 %v398
    %v435 = vunpack.c.l.b16 %v399
    %v436 = vunpack.c.l.b16 %v400
    %v437 = vunpack.c.l.b16 %v401
    %v438 = vunpack.c.l.b16 %v402
    %v439 = vunpack.c.l.b16 %v403
    %v440 = vpack.c.b16 %v425, %v424
    %v441 = vpack.c.b16 %v427, %v426
    %v442 = vpack.c.b16 %v429, %v428
    %v443 = vpack.c.b16 %v431, %v430
    %v444 = vpack.c.b16 %v433, %v432
    %v445 = vpack.c.b16 %v435, %v434
    %v446 = vpack.c.b16 %v437, %v436
    %v447 = vpack.c.b16 %v439, %v438
    %456 = vmatprep.subr.bf16.mxu0 0
    %457 = vmatpush1.bf16.msra.mxu0 %v440
    %458 = vmatprep.subr.bf16.mxu0 0
    %459 = vmatpush1.bf16.msra.mxu0 %v441
    %460 = vmatprep.subr.bf16.mxu0 0
    %461 = vmatpush1.bf16.msra.mxu0 %v442
    %462 = vmatprep.subr.bf16.mxu0 0
    %463 = vmatpush1.bf16.msra.mxu0 %v443
    %464 = vmatprep.subr.bf16.mxu0 0
    %465 = vmatpush1.bf16.msra.mxu0 %v444
    %466 = vmatprep.subr.bf16.mxu0 0
    %467 = vmatpush1.bf16.msra.mxu0 %v445
    %468 = vmatprep.subr.bf16.mxu0 0
    %469 = vmatpush1.bf16.msra.mxu0 %v446
    %470 = vmatprep.subr.bf16.mxu0 0
    %471 = vmatpush1.bf16.msra.mxu0 %v447
    %472 = vmatprep.subr.bf16.mxu0 0
    %473 = vmatpush1.bf16.msra.mxu0 0
    %474 = vmatprep.subr.bf16.mxu0 0
    %475 = vmatpush1.bf16.msra.mxu0 0
    %476 = vmatprep.subr.bf16.mxu0 0
    %477 = vmatpush1.bf16.msra.mxu0 0
    %478 = vmatprep.subr.bf16.mxu0 0
    %479 = vmatpush1.bf16.msra.mxu0 0
    %480 = vmatprep.subr.bf16.mxu0 0
    %481 = vmatpush1.bf16.msra.mxu0 0
    %482 = vmatprep.subr.bf16.mxu0 0
    %483 = vmatpush1.bf16.msra.mxu0 0
    %484 = vmatprep.subr.bf16.mxu0 0
    %485 = vmatpush1.bf16.msra.mxu0 0
    %486 = vmatprep.subr.bf16.mxu0 0
    %487 = vmatpush1.bf16.msra.mxu0 0
    %488 = vmatprep.mubr.bf16.mxu0 0
    %489 = vmatmul.mubr.bf16.gmra.mrb[0].mxu0 %v386
    %v490 = vpop.f32.mrb[0].mxu0
    %v491 = vadd.f32 %v407, %v490
    %v492 = vpop.f32.mrb[0].mxu0
    %v493 = vpop.f32.mrb[0].mxu0
    %v494 = vadd.f32 %v407, %v493
    %v495 = vpop.f32.mrb[0].mxu0
    %496 = vdwg.mxu0
    %497 = vadd.xlane.f32.xlu0 %v491
    %v498 = vpop.xlane.xlu0 %497
    %499 = vadd.xlane.f32.xlu0 %v494
    %v500 = vpop.xlane.xlu0 %499
    %v501 = vmul.f32 %v491, %v491
    %v502 = vmul.f32 %v494, %v494
    %503 = vadd.xlane.f32.xlu0 %v501
    %v504 = vpop.xlane.xlu0 %503
    %505 = vadd.xlane.f32.xlu0 %v502
    %v506 = vpop.xlane.xlu0 %505
    %v507 = vmul.f32 %v498, 0.03125
    %v508 = vmul.f32 %v500, 0.03125
    %v509 = vmul.f32 %v504, 0.03125
    %v510 = vmul.f32 %v506, 0.03125
    %v511 = vmul.f32 %v507, %v507
    %v512 = vmul.f32 %v508, %v508
    %v513 = vsub.f32 %v509, %v511
    %v514 = vsub.f32 %v510, %v512
    %v515 = vmax.f32 %v513, 0.0
    %v516 = vmax.f32 %v514, 0.0
    %v517 = vsub.f32 %v491, %v507
    %v518 = vsub.f32 %v494, %v508
    %v519 = vadd.f32 %v515, 1e-05
    %v520 = vadd.f32 %v516, 1e-05
    %v521 = vrsqrt.pop %v519
    %v522 = vrsqrt.pop %v520
    %v523 = vmul.f32 %v517, %v521
    %v524 = vmul.f32 %v518, %v522
    %v525 = vlaneseq
    %v526 = vshrl.u32 %v525, 7
    %v527 = vsub.s32 7, %v526
    %v528 = vrot.slane %v72, %v527
    %v529 = vmul.f32 %v523, %v528
    %v530 = vmul.f32 %v524, %v528
    %v531 = vlaneseq
    %v532 = vshrl.u32 %v531, 7
    %v533 = vsub.s32 0, %v532
    %v534 = vrot.slane %v73, %v533
    %v535 = vadd.f32 %v529, %v534
    %v536 = vadd.f32 %v530, %v534
    %v537 = vmax.f32 %v535, 0.0
    %v538 = vmax.f32 %v536, 0.0
    %v539 = vpack.c.bf16 %v538, %v537
    %v540 = vld [vmem:[#allocation7] sm:$0xf]
    %v541 = vld [vmem:[#allocation7 + $0x4] sm:$0xf]
    %v542 = vld [vmem:[#allocation7 + $0x8] sm:$0xf]
    %v543 = vld [vmem:[#allocation7 + $0xc] sm:$0xf]
    %v544 = vld [vmem:[#allocation7 + $0x10] sm:$0xf]
    %v545 = vld [vmem:[#allocation7 + $0x14] sm:$0xf]
    %v546 = vld [vmem:[#allocation7 + $0x18] sm:$0xf]
    %v547 = vld [vmem:[#allocation7 + $0x1c] sm:$0xf]
    %v548 = vld [vmem:[#allocation7 + $0x20] sm:$0xf]
    %v549 = vld [vmem:[#allocation7 + $0x24] sm:$0xf]
    %v550 = vld [vmem:[#allocation7 + $0x28] sm:$0xf]
    %v551 = vld [vmem:[#allocation7 + $0x2c] sm:$0xf]
    %v552 = vld [vmem:[#allocation7 + $0x30] sm:$0xf]
    %v553 = vld [vmem:[#allocation7 + $0x34] sm:$0xf]
    %v554 = vld [vmem:[#allocation7 + $0x38] sm:$0xf]
    %v555 = vld [vmem:[#allocation7 + $0x3c] sm:$0xf]
    %v556 = vld [vmem:[%s6] sm:$0x1]
    %v558 = vlaneseq
    %v559 = vshrl.u32 %v558, 7
    %v560 = vsub.s32 0, %v559
    %v561 = vrot.slane %v556, %v560
    %v579 = vunpack.c.l.b16 %v540
    %v580 = vunpack.c.l.b16 %v541
    %v581 = vunpack.c.l.b16 %v542
    %v582 = vunpack.c.l.b16 %v543
    %v583 = vunpack.c.l.b16 %v544
    %v584 = vunpack.c.l.b16 %v545
    %v585 = vunpack.c.l.b16 %v546
    %v586 = vunpack.c.l.b16 %v547
    %v587 = vunpack.c.l.b16 %v548
    %v588 = vunpack.c.l.b16 %v549
    %v589 = vunpack.c.l.b16 %v550
    %v590 = vunpack.c.l.b16 %v551
    %v591 = vunpack.c.l.b16 %v552
    %v592 = vunpack.c.l.b16 %v553
    %v593 = vunpack.c.l.b16 %v554
    %v594 = vunpack.c.l.b16 %v555
    %v595 = vpack.c.b16 %v580, %v579
    %v596 = vpack.c.b16 %v582, %v581
    %v597 = vpack.c.b16 %v584, %v583
    %v598 = vpack.c.b16 %v586, %v585
    %v599 = vpack.c.b16 %v588, %v587
    %v600 = vpack.c.b16 %v590, %v589
    %v601 = vpack.c.b16 %v592, %v591
    %v602 = vpack.c.b16 %v594, %v593
    %611 = vmatprep.subr.bf16.mxu0 0
    %612 = vmatpush1.bf16.msra.mxu0 %v595
    %613 = vmatprep.subr.bf16.mxu0 0
    %614 = vmatpush1.bf16.msra.mxu0 %v596
    %615 = vmatprep.subr.bf16.mxu0 0
    %616 = vmatpush1.bf16.msra.mxu0 %v597
    %617 = vmatprep.subr.bf16.mxu0 0
    %618 = vmatpush1.bf16.msra.mxu0 %v598
    %619 = vmatprep.subr.bf16.mxu0 0
    %620 = vmatpush1.bf16.msra.mxu0 %v599
    %621 = vmatprep.subr.bf16.mxu0 0
    %622 = vmatpush1.bf16.msra.mxu0 %v600
    %623 = vmatprep.subr.bf16.mxu0 0
    %624 = vmatpush1.bf16.msra.mxu0 %v601
    %625 = vmatprep.subr.bf16.mxu0 0
    %626 = vmatpush1.bf16.msra.mxu0 %v602
    %627 = vmatprep.subr.bf16.mxu0 0
    %628 = vmatpush1.bf16.msra.mxu0 0
    %629 = vmatprep.subr.bf16.mxu0 0
    %630 = vmatpush1.bf16.msra.mxu0 0
    %631 = vmatprep.subr.bf16.mxu0 0
    %632 = vmatpush1.bf16.msra.mxu0 0
    %633 = vmatprep.subr.bf16.mxu0 0
    %634 = vmatpush1.bf16.msra.mxu0 0
    %635 = vmatprep.subr.bf16.mxu0 0
    %636 = vmatpush1.bf16.msra.mxu0 0
    %637 = vmatprep.subr.bf16.mxu0 0
    %638 = vmatpush1.bf16.msra.mxu0 0
    %639 = vmatprep.subr.bf16.mxu0 0
    %640 = vmatpush1.bf16.msra.mxu0 0
    %641 = vmatprep.subr.bf16.mxu0 0
    %642 = vmatpush1.bf16.msra.mxu0 0
    %643 = vmatprep.mubr.bf16.mxu0 0
    %644 = vmatmul.mubr.bf16.gmra.mrb[0].mxu0 %v539
    %v645 = vpop.f32.mrb[0].mxu0
    %v646 = vadd.f32 %v561, %v645
    %v647 = vpop.f32.mrb[0].mxu0
    %v648 = vpop.f32.mrb[0].mxu0
    %v649 = vadd.f32 %v561, %v648
    %v650 = vpop.f32.mrb[0].mxu0
    %651 = vdwg.mxu0
    %652 = vst [vmem:[#allocation8] sm:$0xff] %v646
    %653 = vst [vmem:[#allocation8 + $0x8] sm:$0xff] %v649
    // Predicated region
    $region46: #{tpu_custom_call.1} parent=1 // pred_check
      _
    $region47: #{tpu_custom_call.1} parent=1 // pred_check_branch
      %655 = sbr.rel (0) target = $region49
    $region48: #{tpu_custom_call.1} parent=1 // pred_region
      %s657 = ssub.s32 256, 256
      %658 = vsyncadd [#allocation4], %s657
      %s659 = sshll.u32 [#allocation8], 4
      %s660 = int_to_ptr.vmem [resolvable:$true] %s659
      %665 = dma.vmem_to_hbm [thread:$0]  %s660, 256, %s8, [#allocation4], 128, 128, 8
    $region49: #{tpu_custom_call.1} parent=1 // pred_fallthru
      _
    // Predicated region
    $region50: #{tpu_custom_call.1} parent=1 // pred_check
      _
    $region51: #{tpu_custom_call.1} parent=1 // pred_check_branch
      %667 = sbr.rel (0) target = $region53
    $region52: #{tpu_custom_call.1} parent=1 // pred_region
      %668 = dma.done [#allocation4], 256
    $region53: #{tpu_custom_call.1} parent=1 // pred_fallthru
      _
    %669 = vsyncpa [#allocation3], 1
    %670 = vsyncpa [#allocation6], 1
    %671 = vsyncpa [#allocation4], 1

</llo_original>
